<compile_context>
chip_gen: v7x
topology: tpu7x:2x2x1
jax: 0.10.0
libtpu: 0.0.40
codegen_flags: <defaults>
</compile_context>

<pallas_src>
import functools

import jax
import jax.numpy as jnp
from jax.experimental import pallas as pl
from jax.experimental.pallas import tpu as pltpu

_EPS = 1e-5
_LANE = 128
_BF16_SUBLANE = 16                      # bf16 packs 2 rows/sublane -> M tiles % 16
_VMEM_LIMIT = 48 * 1024 * 1024          # <= v7x physical (64 MiB), plenty on v5e/v6e
_VMEM_BUDGET = 36 * 1024 * 1024         # working-set target (pipeline headroom)


def _round_up(x, m):
    return (x + m - 1) // m * m


def _cdiv(a, b):
    return -(-a // b)


def _pad2d(a, rows, cols):
    r, c = a.shape
    if rows == r and cols == c:
        return a
    return jnp.pad(a, ((0, rows - r), (0, cols - c)))


def _choose_tm(m):
    """Row tile: <=512 rows, multiple of 16, >=2 blocks when possible (v7x megacore),
    and sized to avoid near-2x M padding."""
    n_blocks = max(2, _cdiv(m, 512))
    tm = min(512, _round_up(_cdiv(m, n_blocks), _BF16_SUBLANE))
    return tm, _round_up(m, tm)


# ----------------------------- Pallas kernels ------------------------------ #
# Resident-weight kernels: grid is 1-D over M only; the full (Kp, Coutp) weight is
# a single constant-index block (DMA'd once), so no K accumulation is needed and
# the epilogue writes o_ref (bf16) directly.
def _conv_bn_kernel(p_ref, w_ref, shift_ref, o_ref, *, relu):
    acc = jnp.dot(p_ref[...], w_ref[...], preferred_element_type=jnp.float32)
    acc = acc + shift_ref[...]
    if relu:
        acc = jnp.maximum(acc, 0.0)
    o_ref[...] = acc.astype(o_ref.dtype)


def _conv_bn_addres_relu_kernel(p_ref, w_ref, shift_ref, res_ref, o_ref):
    acc = jnp.dot(p_ref[...], w_ref[...], preferred_element_type=jnp.float32)
    acc = acc + shift_ref[...] + res_ref[...].astype(jnp.float32)
    o_ref[...] = jnp.maximum(acc, 0.0).astype(o_ref.dtype)


def _conv_bn_downsample_relu_kernel(p_ref, w_ref, shift_ref, xs_ref, wd_ref, o_ref):
    # conv2 + bn2 + fused 1x1-strided downsample conv + bn_d + add + relu.
    acc = jnp.dot(p_ref[...], w_ref[...], preferred_element_type=jnp.float32)
    acc = acc + jnp.dot(xs_ref[...], wd_ref[...], preferred_element_type=jnp.float32)
    acc = acc + shift_ref[...]                       # shift = sh2 + sh_downsample
    o_ref[...] = jnp.maximum(acc, 0.0).astype(o_ref.dtype)


# ------------------------------ fused matmul -------------------------------- #
def _fused_conv_matmul(patches, w_flat, shift, *, relu, residual=None, xs=None, wd=None):
    """out = act(patches @ w_flat + shift [+ residual | + xs @ wd]) on the MXU.

    patches : (M, K) bf16 im2col matrix (already bf16 -> single HBM materialization)
    w_flat  : (K, Cout) f32 scale-folded weight; shift: (Cout,) f32 BN shift
    residual: optional (M, C) bf16 tile added in the epilogue (implies ReLU)
    xs, wd  : optional fused 1x1 downsample operands (implies ReLU)

    Returns (M, Coutp) bf16 with Coutp = round_up(Cout, 128) (lane-dense stores);
    callers slice the channel padding lazily (it fuses into the consumer).
    """
    m, kdim = patches.shape
    cout = w_flat.shape[1]
    coutp = _round_up(cout, _LANE)
    kp = _round_up(kdim, _LANE)
    tm, mp = _choose_tm(m)

    def _est(tm_):
        e = 2 * tm_ * kp * 2            # double-buffered bf16 patch tile
        e += 2 * kp * coutp * 2         # resident bf16 weight (x2 to be safe)
        e += 2 * tm_ * coutp * 2        # double-buffered bf16 output tile
        e += 2 * coutp * 4              # shift
        if residual is not None:
            e += 2 * tm_ * coutp * 2
        if xs is not None:
            cinp_ = _round_up(xs.shape[1], _LANE)
            e += 2 * tm_ * cinp_ * 2 + 2 * cinp_ * coutp * 2
        return e

    while _est(tm) > _VMEM_BUDGET and tm > _BF16_SUBLANE:
        tm = max(_BF16_SUBLANE, _round_up(tm // 2, _BF16_SUBLANE))
    mp = _round_up(m, tm)

    # Operands (bf16 MXU inputs, padded to lane-dense shapes in one pass each).
    p_pad = _pad2d(patches.astype(jnp.bfloat16), mp, kp)
    w_pad = _pad2d(w_flat.astype(jnp.bfloat16), kp, coutp)
    sh_pad = _pad2d(shift.astype(jnp.float32)[None, :], 1, coutp)

    in_specs = [
        pl.BlockSpec((tm, kp), lambda i: (i, 0)),        # patch tile (streams over M)
        pl.BlockSpec((kp, coutp), lambda i: (0, 0)),     # resident weight (DMA once)
        pl.BlockSpec((1, coutp), lambda i: (0, 0)),      # BN shift
    ]
    args = [p_pad, w_pad, sh_pad]

    if residual is not None:
        r_pad = _pad2d(residual.astype(jnp.bfloat16), mp, coutp)
        in_specs.append(pl.BlockSpec((tm, coutp), lambda i: (i, 0)))
        args.append(r_pad)
        kernel = _conv_bn_addres_relu_kernel
    elif xs is not None:
        cinp = _round_up(xs.shape[1], _LANE)
        xs_pad = _pad2d(xs.astype(jnp.bfloat16), mp, cinp)
        wd_pad = _pad2d(wd.astype(jnp.bfloat16), cinp, coutp)
        in_specs += [pl.BlockSpec((tm, cinp), lambda i: (i, 0)),
                     pl.BlockSpec((cinp, coutp), lambda i: (0, 0))]
        args += [xs_pad, wd_pad]
        kernel = _conv_bn_downsample_relu_kernel
    else:
        kernel = functools.partial(_conv_bn_kernel, relu=relu)

    out = pl.pallas_call(
        kernel,
        out_shape=jax.ShapeDtypeStruct((mp, coutp), jnp.bfloat16),
        grid=(mp // tm,),
        in_specs=in_specs,
        out_specs=pl.BlockSpec((tm, coutp), lambda i: (i, 0)),
        compiler_params=pltpu.CompilerParams(
            dimension_semantics=("parallel",),
            vmem_limit_bytes=_VMEM_LIMIT,
        ),
    )(*args)
    return out if mp == m else out[:m]


# ------------------------------- JAX glue ---------------------------------- #
def _im2col(x_nhwc, k, stride, padding):
    """NHWC (bf16) -> (N*Ho*Wo, k*k*C) patches, rows ordered (n, ho, wo),
    patch features ordered (kh, kw, c)."""
    n, h, w, c = x_nhwc.shape
    xp = jnp.pad(x_nhwc, ((0, 0), (padding, padding), (padding, padding), (0, 0)))
    ho = (h + 2 * padding - k) // stride + 1
    wo = (w + 2 * padding - k) // stride + 1
    cols = []
    for i in range(k):
        for j in range(k):
            cols.append(xp[:, i:i + stride * ho:stride, j:j + stride * wo:stride, :])
    p = jnp.stack(cols, axis=3)                       # (N, Ho, Wo, k*k, C)
    return p.reshape(n * ho * wo, k * k * c), (ho, wo)


def _fold_bn_into_weight(w_oihw, gamma, beta, mean, var):
    """Fold BN scale into the flattened (kh*kw*Cin, Cout) weight; return (w_f, shift)."""
    co, ci, kh, kw = w_oihw.shape
    scale = gamma / jnp.sqrt(var + _EPS)
    shift = beta - mean * scale
    w_flat = jnp.transpose(w_oihw, (2, 3, 1, 0)).reshape(kh * kw * ci, co)
    return (w_flat * scale[None, :]).astype(jnp.float32), shift.astype(jnp.float32)


def basic_block_forward(x_nchw, params, kernel_size, stride, padding, down):
    x = jnp.transpose(x_nchw, (0, 2, 3, 1)).astype(jnp.bfloat16)   # NHWC, bf16 once
    n, h, w, cin = x.shape
    cout = params["w1"].shape[0]

    # conv1 + bn1 + relu  ->  (m1, coutp) bf16, lane-dense stores
    p1, (ho1, wo1) = _im2col(x, kernel_size, stride, padding)
    w1f, sh1 = _fold_bn_into_weight(params["w1"], params["g1"], params["b1"],
                                    params["m1"], params["v1"])
    y1 = _fused_conv_matmul(p1, w1f, sh1, relu=True)

    # conv2 patches from y1 (channel-padding slice fuses into the im2col gather)
    y1_nhwc = y1[:, :cout].reshape(n, ho1, wo1, cout)
    p2, (ho2, wo2) = _im2col(y1_nhwc, kernel_size, 1, padding)
    w2f, sh2 = _fold_bn_into_weight(params["w2"], params["g2"], params["b2"],
                                    params["m2"], params["v2"])

    if (stride > 1) or down:
        # 1x1 strided downsample conv + BN fused into the conv2 kernel epilogue:
        # out = relu(p2 @ w2f + (sh2 + shd) + xs @ wdf)  -- no residual HBM bounce.
        xs = x[:, ::stride, ::stride, :].reshape(n * ho1 * wo1, cin)
        wdf, shd = _fold_bn_into_weight(params["wd"], params["gd"], params["bd"],
                                        params["md"], params["vd"])
        y2 = _fused_conv_matmul(p2, w2f, sh2 + shd, relu=True, xs=xs, wd=wdf)
    else:
        assert cin == cout and ho2 == h and wo2 == w, \
            "identity residual requires matching input/output shape"
        residual = x.reshape(n * h * w, cin)            # bf16 epilogue operand
        y2 = _fused_conv_matmul(p2, w2f, sh2, relu=True, residual=residual)

    out_nhwc = y2[:, :cout].reshape(n, ho2, wo2, cout)
    return jnp.transpose(out_nhwc, (0, 3, 1, 2)).astype(jnp.float32)   # NCHW f32


# --------------------------- params & reference ----------------------------- #
def init_params(key, in_planes, out_planes, kernel_size, down, stride):
    keys = jax.random.split(key, 16)
    p = {
        "w1": 0.1 * jax.random.normal(keys[0], (out_planes, in_planes, kernel_size, kernel_size), jnp.float32),
        "g1": jax.random.uniform(keys[1], (out_planes,), jnp.float32, 0.5, 1.5),
        "b1": 0.1 * jax.random.normal(keys[2], (out_planes,), jnp.float32),
        "m1": 0.1 * jax.random.normal(keys[3], (out_planes,), jnp.float32),
        "v1": jax.random.uniform(keys[4], (out_planes,), jnp.float32, 0.5, 1.5),
        "w2": 0.1 * jax.random.normal(keys[5], (out_planes, out_planes, kernel_size, kernel_size), jnp.float32),
        "g2": jax.random.uniform(keys[6], (out_planes,), jnp.float32, 0.5, 1.5),
        "b2": 0.1 * jax.random.normal(keys[7], (out_planes,), jnp.float32),
        "m2": 0.1 * jax.random.normal(keys[8], (out_planes,), jnp.float32),
        "v2": jax.random.uniform(keys[9], (out_planes,), jnp.float32, 0.5, 1.5),
    }
    if (stride > 1) or down:
        p.update({
            "wd": 0.1 * jax.random.normal(keys[10], (out_planes, in_planes, 1, 1), jnp.float32),
            "gd": jax.random.uniform(keys[11], (out_planes,), jnp.float32, 0.5, 1.5),
            "bd": 0.1 * jax.random.normal(keys[12], (out_planes,), jnp.float32),
            "md": 0.1 * jax.random.normal(keys[13], (out_planes,), jnp.float32),
            "vd": jax.random.uniform(keys[14], (out_planes,), jnp.float32, 0.5, 1.5),
        })
    return p


def reference_forward(x, params, kernel_size, stride, padding, down):
    """Pure-JAX NCHW reference matching the PyTorch module in eval mode (f32)."""
    def conv(inp, w, s, pad):
        return jax.lax.conv_general_dilated(
            inp, w, (s, s), [(pad, pad), (pad, pad)],
            dimension_numbers=("NCHW", "OIHW", "NCHW"))

    def bn(inp, g, b, m, v):
        rs = lambda a: a[None, :, None, None]
        return (inp - rs(m)) / jnp.sqrt(rs(v) + _EPS) * rs(g) + rs(b)

    out = jnp.maximum(bn(conv(x, params["w1"], stride, padding),
                         params["g1"], params["b1"], params["m1"], params["v1"]), 0.0)
    out = bn(conv(out, params["w2"], 1, padding),
             params["g2"], params["b2"], params["m2"], params["v2"])
    if (stride > 1) or down:
        residual = bn(conv(x, params["wd"], stride, 0),
                      params["gd"], params["bd"], params["md"], params["vd"])
    else:
        residual = x
    return jnp.maximum(out + residual, 0.0)


def _check(out, ref, tol=3e-2):
    # bf16 MXU operands / bf16 intermediates with f32 accumulation.
    err = float(jnp.max(jnp.abs(out - ref)) / (jnp.max(jnp.abs(ref)) + 1e-6))
    assert err < tol, f"max rel-to-scale error {err}"


# ---------------------------------- main ------------------------------------ #
if __name__ == "__main__":
    key = jax.random.PRNGKey(0)
    k_x, k_p1, k_p2 = jax.random.split(key, 3)
    x = jax.random.normal(k_x, (2, 4, 16, 16), jnp.float32)  # NCHW

    fwd = jax.jit(basic_block_forward,
                  static_argnames=("kernel_size", "stride", "padding", "down"))

    # Case 1: BasicBlock(4, 4, kernel_size=3, stride=1, padding=1) -> identity residual
    params1 = init_params(k_p1, 4, 4, 3, down=False, stride=1)
    out1 = fwd(x, params1, kernel_size=3, stride=1, padding=1, down=False)
    ref1 = reference_forward(x, params1, 3, 1, 1, False)
    assert out1.shape == (2, 4, 16, 16)
    _check(out1, ref1)

    # Case 2: BasicBlock(4, 8, kernel_size=3, stride=2, padding=1, down=True) -> downsample
    params2 = init_params(k_p2, 4, 8, 3, down=True, stride=2)
    out2 = fwd(x, params2, kernel_size=3, stride=2, padding=1, down=True)
    ref2 = reference_forward(x, params2, 3, 2, 1, True)
    assert out2.shape == (2, 8, 8, 8)
    _check(out2, ref2)

    jax.block_until_ready((out1, out2))
    print("KERNEL_OK")
</pallas_src>

<mosaic_0001>
module attributes {stable_mosaic.version = 11 : i64} {
  func.func @_conv_bn_kernel(%arg0: i32, %arg1: memref<256x128xbf16, #tpu.memory_space<vmem>>, %arg2: memref<128x128xbf16, #tpu.memory_space<vmem>>, %arg3: memref<1x128xf32, #tpu.memory_space<vmem>>, %arg4: memref<256x128xbf16, #tpu.memory_space<vmem>>) attributes {dimension_semantics = [#tpu.dimension_semantics<parallel>], iteration_bounds = array<i64: 2>, scalar_prefetch = 0 : i64, scratch_operands = 0 : i64, tpu.core_type = #tpu.core_type<tc>, window_params = [{transform_indices = @transform_0, window_bounds = array<i64: 256, 128>}, {pipeline_mode = #tpu.pipeline_mode<synchronous>, transform_indices = @transform_1, window_bounds = array<i64: 128, 128>}, {pipeline_mode = #tpu.pipeline_mode<synchronous>, transform_indices = @transform_2, window_bounds = array<i64: 1, 128>}, {transform_indices = @transform_3, window_bounds = array<i64: 256, 128>}]} {
    %c0 = arith.constant 0 : index
    %c0_0 = arith.constant 0 : index
    %0 = vector.load %arg1[%c0, %c0_0] : memref<256x128xbf16, #tpu.memory_space<vmem>>, vector<256x128xbf16>
    %c0_1 = arith.constant 0 : index
    %c0_2 = arith.constant 0 : index
    %1 = vector.load %arg2[%c0_1, %c0_2] : memref<128x128xbf16, #tpu.memory_space<vmem>>, vector<128x128xbf16>
    %cst = arith.constant dense<0.000000e+00> : vector<256x128xf32>
    %2 = tpu.matmul %0, %1, %cst {dimension_numbers = #tpu.dot_dimension_numbers<[1], [0], [0], [1], [0, 0, 1, 1], [], []>} : vector<256x128xbf16>, vector<128x128xbf16>, vector<256x128xf32> -> vector<256x128xf32>
    %c0_3 = arith.constant 0 : index
    %c0_4 = arith.constant 0 : index
    %3 = vector.load %arg3[%c0_3, %c0_4] : memref<1x128xf32, #tpu.memory_space<vmem>>, vector<1x128xf32>
    %4 = vector.broadcast %3 : vector<1x128xf32> to vector<256x128xf32>
    %5 = arith.addf %2, %4 : vector<256x128xf32>
    %cst_5 = arith.constant 0.000000e+00 : f32
    %6 = vector.broadcast %cst_5 : f32 to vector<256x128xf32>
    %7 = arith.maximumf %5, %6 : vector<256x128xf32>
    %8 = arith.truncf %7 : vector<256x128xf32> to vector<256x128xbf16>
    %c0_6 = arith.constant 0 : index
    %c0_7 = arith.constant 0 : index
    %9 = vector.load %arg4[%c0_6, %c0_7] : memref<256x128xbf16, #tpu.memory_space<vmem>>, vector<256x128xbf16>
    tpu.vector_store %arg4[%c0_6, %c0_7], %8 {strides = array<i32>} : memref<256x128xbf16, #tpu.memory_space<vmem>>, vector<256x128xbf16>,
    return
  }
  func.func @transform_0(%arg0: i32) -> (i32, i32) {
    %c0_i32 = arith.constant 0 : i32
    %c0_i32_0 = arith.constant 0 : i32
    return %arg0, %c0_i32 : i32, i32
  }
  func.func @transform_1(%arg0: i32) -> (i32, i32) {
    %c0_i32 = arith.constant 0 : i32
    %c0_i32_0 = arith.constant 0 : i32
    %c0_i32_1 = arith.constant 0 : i32
    return %c0_i32, %c0_i32_0 : i32, i32
  }
  func.func @transform_2(%arg0: i32) -> (i32, i32) {
    %c0_i32 = arith.constant 0 : i32
    %c0_i32_0 = arith.constant 0 : i32
    %c0_i32_1 = arith.constant 0 : i32
    return %c0_i32, %c0_i32_0 : i32, i32
  }
  func.func @transform_3(%arg0: i32) -> (i32, i32) {
    %c0_i32 = arith.constant 0 : i32
    %c0_i32_0 = arith.constant 0 : i32
    return %arg0, %c0_i32 : i32, i32
  }
}

module attributes {stable_mosaic.version = 11 : i64} {
  func.func @_conv_bn_addres_relu_kernel(%arg0: i32, %arg1: memref<256x128xbf16, #tpu.memory_space<vmem>>, %arg2: memref<128x128xbf16, #tpu.memory_space<vmem>>, %arg3: memref<1x128xf32, #tpu.memory_space<vmem>>, %arg4: memref<256x128xbf16, #tpu.memory_space<vmem>>, %arg5: memref<256x128xbf16, #tpu.memory_space<vmem>>) attributes {dimension_semantics = [#tpu.dimension_semantics<parallel>], iteration_bounds = array<i64: 2>, scalar_prefetch = 0 : i64, scratch_operands = 0 : i64, tpu.core_type = #tpu.core_type<tc>, window_params = [{transform_indices = @transform_0, window_bounds = array<i64: 256, 128>}, {pipeline_mode = #tpu.pipeline_mode<synchronous>, transform_indices = @transform_1, window_bounds = array<i64: 128, 128>}, {pipeline_mode = #tpu.pipeline_mode<synchronous>, transform_indices = @transform_2, window_bounds = array<i64: 1, 128>}, {transform_indices = @transform_3, window_bounds = array<i64: 256, 128>}, {transform_indices = @transform_4, window_bounds = array<i64: 256, 128>}]} {
    %c0 = arith.constant 0 : index
    %c0_0 = arith.constant 0 : index
    %0 = vector.load %arg1[%c0, %c0_0] : memref<256x128xbf16, #tpu.memory_space<vmem>>, vector<256x128xbf16>
    %c0_1 = arith.constant 0 : index
    %c0_2 = arith.constant 0 : index
    %1 = vector.load %arg2[%c0_1, %c0_2] : memref<128x128xbf16, #tpu.memory_space<vmem>>, vector<128x128xbf16>
    %cst = arith.constant dense<0.000000e+00> : vector<256x128xf32>
    %2 = tpu.matmul %0, %1, %cst {dimension_numbers = #tpu.dot_dimension_numbers<[1], [0], [0], [1], [0, 0, 1, 1], [], []>} : vector<256x128xbf16>, vector<128x128xbf16>, vector<256x128xf32> -> vector<256x128xf32>
    %c0_3 = arith.constant 0 : index
    %c0_4 = arith.constant 0 : index
    %3 = vector.load %arg3[%c0_3, %c0_4] : memref<1x128xf32, #tpu.memory_space<vmem>>, vector<1x128xf32>
    %4 = vector.broadcast %3 : vector<1x128xf32> to vector<256x128xf32>
    %5 = arith.addf %2, %4 : vector<256x128xf32>
    %c0_5 = arith.constant 0 : index
    %c0_6 = arith.constant 0 : index
    %6 = vector.load %arg4[%c0_5, %c0_6] : memref<256x128xbf16, #tpu.memory_space<vmem>>, vector<256x128xbf16>
    %7 = arith.extf %6 : vector<256x128xbf16> to vector<256x128xf32>
    %8 = arith.addf %5, %7 : vector<256x128xf32>
    %cst_7 = arith.constant 0.000000e+00 : f32
    %9 = vector.broadcast %cst_7 : f32 to vector<256x128xf32>
    %10 = arith.maximumf %8, %9 : vector<256x128xf32>
    %11 = arith.truncf %10 : vector<256x128xf32> to vector<256x128xbf16>
    %c0_8 = arith.constant 0 : index
    %c0_9 = arith.constant 0 : index
    %12 = vector.load %arg5[%c0_8, %c0_9] : memref<256x128xbf16, #tpu.memory_space<vmem>>, vector<256x128xbf16>
    tpu.vector_store %arg5[%c0_8, %c0_9], %11 {strides = array<i32>} : memref<256x128xbf16, #tpu.memory_space<vmem>>, vector<256x128xbf16>,
    return
  }
  func.func @transform_0(%arg0: i32) -> (i32, i32) {
    %c0_i32 = arith.constant 0 : i32
    %c0_i32_0 = arith.constant 0 : i32
    return %arg0, %c0_i32 : i32, i32
  }
  func.func @transform_1(%arg0: i32) -> (i32, i32) {
    %c0_i32 = arith.constant 0 : i32
    %c0_i32_0 = arith.constant 0 : i32
    %c0_i32_1 = arith.constant 0 : i32
    return %c0_i32, %c0_i32_0 : i32, i32
  }
  func.func @transform_2(%arg0: i32) -> (i32, i32) {
    %c0_i32 = arith.constant 0 : i32
    %c0_i32_0 = arith.constant 0 : i32
    %c0_i32_1 = arith.constant 0 : i32
    return %c0_i32, %c0_i32_0 : i32, i32
  }
  func.func @transform_3(%arg0: i32) -> (i32, i32) {
    %c0_i32 = arith.constant 0 : i32
    %c0_i32_0 = arith.constant 0 : i32
    return %arg0, %c0_i32 : i32, i32
  }
  func.func @transform_4(%arg0: i32) -> (i32, i32) {
    %c0_i32 = arith.constant 0 : i32
    %c0_i32_0 = arith.constant 0 : i32
    return %arg0, %c0_i32 : i32, i32
  }
}

</mosaic_0001>

<llo_original>
// kernel: basic_block_forward.2
$region0: #{basic_block_forward.2}
  #allocation0 [shape = 'u32[]', space=smem, size = 0x4, offset = 0x4, fixed_abs, tag = 'smem constant byte address 0x4 - core index']
  #allocation1 [shape = 'u32[144,128]{1,0:T(1,128)}', space=vmem, size = 0x12000, scoped, tag = 'internal scratch']
  %s0 = inlined_call_operand.vmem [shape: bf16[512,128], index: 0, kind: input, shape index: {}]
  %s1 = inlined_call_operand.vmem [shape: bf16[128,128], index: 1, kind: input, shape index: {}]
  %s2 = inlined_call_operand.vmem [shape: f32[1,128], index: 2, kind: input, shape index: {}]
  %s3 = inlined_call_operand.vmem [shape: bf16[512,128], index: 3, kind: output, shape index: {}]
  %s4 = sld [smem:[#allocation0]]
  $region45: #{basic_block_forward.2} parent=0
    _
  %s6 = ssub.s32 1, %s4
  %s7 = scalar_select 0, %s6, %s4
  loop: start=0, step=1, limit=4
  $region2: #{basic_block_forward.2} parent=0 // loop_pre_header
    _
  $region3: #{basic_block_forward.2} parent=0 // loop_header
    %s9 = sphi 0, %s13
    %p10 = scmp.ge.s32.totalorder %s9, 4
    %s19 = sphi 0, %s21
    %s22 = sphi 0, %s19
    %s23 = sphi 0, %s22
    %s39 = sphi 0, %s23
    %s43 = sphi 0, %s43
    %s45 = sphi 0, %s43
    %s46 = sphi 0, %s45
    %s60 = sphi 0, %s46
    %s64 = sphi 0, %s64
    %s66 = sphi 0, %s64
    %s67 = sphi 0, %s66
    %s81 = sphi 0, %s67
    %s87 = sphi 0, %s89
    %s90 = sphi 0, %s87
    %s91 = sphi 0, %s90
    %s107 = sphi 0, %s91
  $region4: #{basic_block_forward.2} parent=0 // loop_header_branch
    %12 = sbr.rel (%p10) target = $region8
  $region5: #{basic_block_forward.2} parent=0 // loop_body
    %s14 = ssub.s32 %s9, 1
    %s15 = ssub.s32 %s9, 2
    %s16 = sadd.s32 %s9, 1
    %s17 = ssub.s32 %s9, %s16
    %p18 = scmp.eq.s32.totalorder %s17, 0
    %s20 = sadd.s32 %s19, 1
    %s21 = scalar_select %p18, %s19, %s20
    %p24 = pneg %p18
    %p25 = scmp.eq.s32.totalorder %s9, 1
    %p26 = por %p24, %p25
    %p27 = scmp.ne.s32.totalorder %s19, %s22
    %p28 = scmp.eq.s32.totalorder %s9, 0
    %p29 = por %p27, %p28
    %p30 = scmp.ne.s32.totalorder %s19, %s22
    %p31 = scmp.eq.s32.totalorder %s14, 1
    %p32 = por %p30, %p31
    %p33 = scmp.ne.s32.totalorder %s22, %s23
    %p34 = scmp.eq.s32.totalorder %s14, 0
    %p35 = por %p33, %p34
    %p36 = scmp.ne.s32.totalorder %s22, %s23
    %p37 = scmp.eq.s32.totalorder %s15, 1
    %p38 = por %p36, %p37
    %p40 = scmp.ne.s32.totalorder %s23, %s39
    %p41 = scmp.eq.s32.totalorder %s15, 0
    %p42 = por %p40, %p41
    %s44 = sadd.s32 %s43, 1
    %p47 = scmp.eq.s32.totalorder %s9, 1
    %p48 = scmp.ne.s32.totalorder %s43, %s45
    %p49 = scmp.eq.s32.totalorder %s9, 0
    %p50 = por %p48, %p49
    %p51 = scmp.ne.s32.totalorder %s43, %s45
    %p52 = scmp.eq.s32.totalorder %s14, 1
    %p53 = por %p51, %p52
    %p54 = scmp.ne.s32.totalorder %s45, %s46
    %p55 = scmp.eq.s32.totalorder %s14, 0
    %p56 = por %p54, %p55
    %p57 = scmp.ne.s32.totalorder %s45, %s46
    %p58 = scmp.eq.s32.totalorder %s15, 1
    %p59 = por %p57, %p58
    %p61 = scmp.ne.s32.totalorder %s46, %s60
    %p62 = scmp.eq.s32.totalorder %s15, 0
    %p63 = por %p61, %p62
    %s65 = sadd.s32 %s64, 1
    %p68 = scmp.eq.s32.totalorder %s9, 1
    %p69 = scmp.ne.s32.totalorder %s64, %s66
    %p70 = scmp.eq.s32.totalorder %s9, 0
    %p71 = por %p69, %p70
    %p72 = scmp.ne.s32.totalorder %s64, %s66
    %p73 = scmp.eq.s32.totalorder %s14, 1
    %p74 = por %p72, %p73
    %p75 = scmp.ne.s32.totalorder %s66, %s67
    %p76 = scmp.eq.s32.totalorder %s14, 0
    %p77 = por %p75, %p76
    %p78 = scmp.ne.s32.totalorder %s66, %s67
    %p79 = scmp.eq.s32.totalorder %s15, 1
    %p80 = por %p78, %p79
    %p82 = scmp.ne.s32.totalorder %s67, %s81
    %p83 = scmp.eq.s32.totalorder %s15, 0
    %p84 = por %p82, %p83
    %s85 = ssub.s32 %s9, %s16
    %p86 = scmp.eq.s32.totalorder %s85, 0
    %s88 = sadd.s32 %s87, 1
    %s89 = scalar_select %p86, %s87, %s88
    %p92 = pneg %p86
    %p93 = scmp.eq.s32.totalorder %s9, 1
    %p94 = por %p92, %p93
    %p95 = scmp.ne.s32.totalorder %s87, %s90
    %p96 = scmp.eq.s32.totalorder %s9, 0
    %p97 = por %p95, %p96
    %p98 = scmp.ne.s32.totalorder %s87, %s90
    %p99 = scmp.eq.s32.totalorder %s14, 1
    %p100 = por %p98, %p99
    %p101 = scmp.ne.s32.totalorder %s90, %s91
    %p102 = scmp.eq.s32.totalorder %s14, 0
    %p103 = por %p101, %p102
    %p104 = scmp.ne.s32.totalorder %s90, %s91
    %p105 = scmp.eq.s32.totalorder %s15, 1
    %p106 = por %p104, %p105
    %p108 = scmp.ne.s32.totalorder %s91, %s107
    %p109 = scmp.eq.s32.totalorder %s15, 0
    %p110 = por %p108, %p109
    %p111 = scmp.le.s32.totalorder 1, %s9
    %p112 = scmp.lt.s32.totalorder %s9, 3
    %p113 = pnand %p111, %p112
    %p114 = pneg %p113
    // Predicated region
    $region9: #{basic_block_forward.2} parent=5 // pred_check
      _
    $region10: #{basic_block_forward.2} parent=5 // pred_check_branch
      %116 = sbr.rel (%p113) target = $region12
    $region11: #{basic_block_forward.2} parent=5 // pred_region
      %s117 = ssub.s32 %s9, 1
      // Predicated region
      $region13: #{basic_block_forward.2} parent=11 // pred_check
        %p118 = pneg %p56
      $region14: #{basic_block_forward.2} parent=11 // pred_check_branch
        %120 = sbr.rel (%p118) target = $region16
      $region15: #{basic_block_forward.2} parent=11 // pred_region
        _
      $region16: #{basic_block_forward.2} parent=11 // pred_fallthru
        _
      // Predicated region
      $region17: #{basic_block_forward.2} parent=11 // pred_check
        %p121 = pneg %p77
      $region18: #{basic_block_forward.2} parent=11 // pred_check_branch
        %123 = sbr.rel (%p121) target = $region20
      $region19: #{basic_block_forward.2} parent=11 // pred_region
        _
      $region20: #{basic_block_forward.2} parent=11 // pred_fallthru
        _
    $region12: #{basic_block_forward.2} parent=5 // pred_fallthru
      _
    %p124 = scmp.lt.s32.totalorder %s9, 2
    // Predicated region
    $region21: #{basic_block_forward.2} parent=5 // pred_check
      %p125 = pneg %p124
    $region22: #{basic_block_forward.2} parent=5 // pred_check_branch
      %127 = sbr.rel (%p125) target = $region24
    $region23: #{basic_block_forward.2} parent=5 // pred_region
      // Predicated region
      $region25: #{basic_block_forward.2} parent=23 // pred_check
        %p128 = pneg %p29
      $region26: #{basic_block_forward.2} parent=23 // pred_check_branch
        %130 = sbr.rel (%p128) target = $region28
      $region27: #{basic_block_forward.2} parent=23 // pred_region
        %s131 = smul.u32 32, %s9
        %p132 = scmp.lt.s32.totalorder %s131, 63
        %s133 = scalar_select %p132, %s131, 63
        %s134 = smul.addr %s133, 4
        %s135 = scalar_lea.vmem %s0, %s134
        %s136 = smul.u32 32, %s9
      $region28: #{basic_block_forward.2} parent=23 // pred_fallthru
        _
    $region24: #{basic_block_forward.2} parent=5 // pred_fallthru
      _
    %p137 = scmp.le.s32.totalorder 1, %s9
    %p138 = scmp.lt.s32.totalorder %s9, 3
    %p139 = pnand %p137, %p138
    %p140 = pneg %p139
    // Predicated region
    $region29: #{basic_block_forward.2} parent=5 // pred_check
      _
    $region30: #{basic_block_forward.2} parent=5 // pred_check_branch
      %142 = sbr.rel (%p139) target = $region32
    $region31: #{basic_block_forward.2} parent=5 // pred_region
      %s143 = ssub.s32 %s9, 1
      %s144 = smul.u32 32, %s14
      %p145 = scmp.lt.s32.totalorder %s144, 63
      %s146 = scalar_select %p145, %s144, 63
      %s147 = smul.addr %s146, 4
      %s148 = scalar_lea.vmem %s0, %s147
      %p149 = pneg %p35
      %p150 = pneg %p32
      %p151 = pneg %p56
      %p152 = pneg %p53
      %p153 = pneg %p77
      %p154 = pneg %p74
      %p155 = pneg %p103
      %p156 = pneg %p100
      %s157 = smul.u32 32, %s14
      %p158 = scmp.lt.s32.totalorder %s157, 63
      %s159 = scalar_select %p158, %s157, 63
      %s160 = smul.addr %s159, 4
      %s161 = scalar_lea.vmem %s3, %s160
      %s162 = smul.u32 32, %s14
      %p163 = scmp.lt.s32.totalorder %s162, 63
      %s164 = scalar_select %p163, %s162, 63
      %s165 = smul.addr %s164, 4
      %s166 = scalar_lea.vmem %s0, %s165
      %s167 = smul.u32 32, %s14
      %s168 = smul.u32 32, %s14
      %p169 = scmp.lt.s32.totalorder %s168, 63
      %s170 = scalar_select %p169, %s168, 63
      %s171 = smul.addr %s170, 4
      %s172 = scalar_lea.vmem %s3, %s171
      %s173 = smul.u32 32, %s14
      %v175 = vld [vmem:[%s166] sm:$0xf]
      %v176 = vld [vmem:[%s166 + $0x4] sm:$0xf]
      %v177 = vld [vmem:[%s166 + $0x8] sm:$0xf]
      %v178 = vld [vmem:[%s166 + $0xc] sm:$0xf]
      %v179 = vld [vmem:[%s166 + $0x10] sm:$0xf]
      %v180 = vld [vmem:[%s166 + $0x14] sm:$0xf]
      %v181 = vld [vmem:[%s166 + $0x18] sm:$0xf]
      %v182 = vld [vmem:[%s166 + $0x1c] sm:$0xf]
      %v183 = vld [vmem:[%s166 + $0x20] sm:$0xf]
      %v184 = vld [vmem:[%s166 + $0x24] sm:$0xf]
      %v185 = vld [vmem:[%s166 + $0x28] sm:$0xf]
      %v186 = vld [vmem:[%s166 + $0x2c] sm:$0xf]
      %v187 = vld [vmem:[%s166 + $0x30] sm:$0xf]
      %v188 = vld [vmem:[%s166 + $0x34] sm:$0xf]
      %v189 = vld [vmem:[%s166 + $0x38] sm:$0xf]
      %v190 = vld [vmem:[%s166 + $0x3c] sm:$0xf]
      %v191 = vld [vmem:[%s166 + $0x40] sm:$0xf]
      %v192 = vld [vmem:[%s166 + $0x44] sm:$0xf]
      %v193 = vld [vmem:[%s166 + $0x48] sm:$0xf]
      %v194 = vld [vmem:[%s166 + $0x4c] sm:$0xf]
      %v195 = vld [vmem:[%s166 + $0x50] sm:$0xf]
      %v196 = vld [vmem:[%s166 + $0x54] sm:$0xf]
      %v197 = vld [vmem:[%s166 + $0x58] sm:$0xf]
      %v198 = vld [vmem:[%s166 + $0x5c] sm:$0xf]
      %v199 = vld [vmem:[%s166 + $0x60] sm:$0xf]
      %v200 = vld [vmem:[%s166 + $0x64] sm:$0xf]
      %v201 = vld [vmem:[%s166 + $0x68] sm:$0xf]
      %v202 = vld [vmem:[%s166 + $0x6c] sm:$0xf]
      %v203 = vld [vmem:[%s166 + $0x70] sm:$0xf]
      %v204 = vld [vmem:[%s166 + $0x74] sm:$0xf]
      %v205 = vld [vmem:[%s166 + $0x78] sm:$0xf]
      %v206 = vld [vmem:[%s166 + $0x7c] sm:$0xf]
      %v207 = vld [vmem:[%s1] sm:$0xf]
      %v208 = vld [vmem:[%s1 + $0x4] sm:$0xf]
      %v209 = vld [vmem:[%s1 + $0x8] sm:$0xf]
      %v210 = vld [vmem:[%s1 + $0xc] sm:$0xf]
      %v211 = vld [vmem:[%s1 + $0x10] sm:$0xf]
      %v212 = vld [vmem:[%s1 + $0x14] sm:$0xf]
      %v213 = vld [vmem:[%s1 + $0x18] sm:$0xf]
      %v214 = vld [vmem:[%s1 + $0x1c] sm:$0xf]
      %v215 = vld [vmem:[%s1 + $0x20] sm:$0xf]
      %v216 = vld [vmem:[%s1 + $0x24] sm:$0xf]
      %v217 = vld [vmem:[%s1 + $0x28] sm:$0xf]
      %v218 = vld [vmem:[%s1 + $0x2c] sm:$0xf]
      %v219 = vld [vmem:[%s1 + $0x30] sm:$0xf]
      %v220 = vld [vmem:[%s1 + $0x34] sm:$0xf]
      %v221 = vld [vmem:[%s1 + $0x38] sm:$0xf]
      %v222 = vld [vmem:[%s1 + $0x3c] sm:$0xf]
      %v223 = vld [vmem:[%s2] sm:$0x1]
      %v225 = vlaneseq
      %v226 = vshrl.u32 %v225, 7
      %v227 = vsub.s32 0, %v226
      %v228 = vrot.slane %v223, %v227
      %v262 = vunpack.c.l.b16 %v175
      %v263 = vunpack.c.l.b16 %v176
      %v264 = vunpack.c.l.b16 %v177
      %v265 = vunpack.c.l.b16 %v178
      %v266 = vunpack.c.l.b16 %v179
      %v267 = vunpack.c.l.b16 %v180
      %v268 = vunpack.c.l.b16 %v181
      %v269 = vunpack.c.l.b16 %v182
      %v270 = vunpack.c.l.b16 %v183
      %v271 = vunpack.c.l.b16 %v184
      %v272 = vunpack.c.l.b16 %v185
      %v273 = vunpack.c.l.b16 %v186
      %v274 = vunpack.c.l.b16 %v187
      %v275 = vunpack.c.l.b16 %v188
      %v276 = vunpack.c.l.b16 %v189
      %v277 = vunpack.c.l.b16 %v190
      %v278 = vunpack.c.l.b16 %v191
      %v279 = vunpack.c.l.b16 %v192
      %v280 = vunpack.c.l.b16 %v193
      %v281 = vunpack.c.l.b16 %v194
      %v282 = vunpack.c.l.b16 %v195
      %v283 = vunpack.c.l.b16 %v196
      %v284 = vunpack.c.l.b16 %v197
      %v285 = vunpack.c.l.b16 %v198
      %v286 = vunpack.c.l.b16 %v199
      %v287 = vunpack.c.l.b16 %v200
      %v288 = vunpack.c.l.b16 %v201
      %v289 = vunpack.c.l.b16 %v202
      %v290 = vunpack.c.l.b16 %v203
      %v291 = vunpack.c.l.b16 %v204
      %v292 = vunpack.c.l.b16 %v205
      %v293 = vunpack.c.l.b16 %v206
      %v294 = vpack.c.b16 %v263, %v262
      %v295 = vpack.c.b16 %v265, %v264
      %v296 = vpack.c.b16 %v267, %v266
      %v297 = vpack.c.b16 %v269, %v268
      %v298 = vpack.c.b16 %v271, %v270
      %v299 = vpack.c.b16 %v273, %v272
      %v300 = vpack.c.b16 %v275, %v274
      %v301 = vpack.c.b16 %v277, %v276
      %v302 = vpack.c.b16 %v279, %v278
      %v303 = vpack.c.b16 %v281, %v280
      %v304 = vpack.c.b16 %v283, %v282
      %v305 = vpack.c.b16 %v285, %v284
      %v306 = vpack.c.b16 %v287, %v286
      %v307 = vpack.c.b16 %v289, %v288
      %v308 = vpack.c.b16 %v291, %v290
      %v309 = vpack.c.b16 %v293, %v292
      %v342 = vunpack.c.l.b16 %v207
      %v343 = vunpack.c.l.b16 %v208
      %v344 = vunpack.c.l.b16 %v209
      %v345 = vunpack.c.l.b16 %v210
      %v346 = vunpack.c.l.b16 %v211
      %v347 = vunpack.c.l.b16 %v212
      %v348 = vunpack.c.l.b16 %v213
      %v349 = vunpack.c.l.b16 %v214
      %v350 = vunpack.c.l.b16 %v215
      %v351 = vunpack.c.l.b16 %v216
      %v352 = vunpack.c.l.b16 %v217
      %v353 = vunpack.c.l.b16 %v218
      %v354 = vunpack.c.l.b16 %v219
      %v355 = vunpack.c.l.b16 %v220
      %v356 = vunpack.c.l.b16 %v221
      %v357 = vunpack.c.l.b16 %v222
      %v358 = vpack.c.b16 %v343, %v342
      %v359 = vpack.c.b16 %v345, %v344
      %v360 = vpack.c.b16 %v347, %v346
      %v361 = vpack.c.b16 %v349, %v348
      %v362 = vpack.c.b16 %v351, %v350
      %v363 = vpack.c.b16 %v353, %v352
      %v364 = vpack.c.b16 %v355, %v354
      %v365 = vpack.c.b16 %v357, %v356
      %374 = vmatprep.subr.bf16.mxu0 0
      %375 = vmatpush1.bf16.msra.mxu0 %v358
      %376 = vmatprep.subr.bf16.mxu0 0
      %377 = vmatpush1.bf16.msra.mxu0 %v359
      %378 = vmatprep.subr.bf16.mxu0 0
      %379 = vmatpush1.bf16.msra.mxu0 %v360
      %380 = vmatprep.subr.bf16.mxu0 0
      %381 = vmatpush1.bf16.msra.mxu0 %v361
      %382 = vmatprep.subr.bf16.mxu0 0
      %383 = vmatpush1.bf16.msra.mxu0 %v362
      %384 = vmatprep.subr.bf16.mxu0 0
      %385 = vmatpush1.bf16.msra.mxu0 %v363
      %386 = vmatprep.subr.bf16.mxu0 0
      %387 = vmatpush1.bf16.msra.mxu0 %v364
      %388 = vmatprep.subr.bf16.mxu0 0
      %389 = vmatpush1.bf16.msra.mxu0 %v365
      %390 = vmatprep.subr.bf16.mxu0 0
      %391 = vmatpush1.bf16.msra.mxu0 0
      %392 = vmatprep.subr.bf16.mxu0 0
      %393 = vmatpush1.bf16.msra.mxu0 0
      %394 = vmatprep.subr.bf16.mxu0 0
      %395 = vmatpush1.bf16.msra.mxu0 0
      %396 = vmatprep.subr.bf16.mxu0 0
      %397 = vmatpush1.bf16.msra.mxu0 0
      %398 = vmatprep.subr.bf16.mxu0 0
      %399 = vmatpush1.bf16.msra.mxu0 0
      %400 = vmatprep.subr.bf16.mxu0 0
      %401 = vmatpush1.bf16.msra.mxu0 0
      %402 = vmatprep.subr.bf16.mxu0 0
      %403 = vmatpush1.bf16.msra.mxu0 0
      %404 = vmatprep.subr.bf16.mxu0 0
      %405 = vmatpush1.bf16.msra.mxu0 0
      %406 = vmatprep.mubr.bf16.mxu0 0
      %407 = vmatmul.mubr.bf16.gmra.mrb[0].mxu0 %v294
      %v408 = vpop.f32.mrb[0].mxu0
      %v409 = vadd.f32 %v228, %v408
      %v410 = vpop.f32.mrb[0].mxu0
      %v411 = vpop.f32.mrb[0].mxu0
      %v412 = vadd.f32 %v228, %v411
      %v413 = vpop.f32.mrb[0].mxu0
      %414 = vmatprep.mubr.bf16.mxu0 0
      %415 = vmatmul.mubr.bf16.gmra.mrb[0].mxu0 %v295
      %v416 = vpop.f32.mrb[0].mxu0
      %v417 = vadd.f32 %v228, %v416
      %v418 = vpop.f32.mrb[0].mxu0
      %v419 = vpop.f32.mrb[0].mxu0
      %v420 = vadd.f32 %v228, %v419
      %v421 = vpop.f32.mrb[0].mxu0
      %422 = vmatprep.mubr.bf16.mxu0 0
      %423 = vmatmul.mubr.bf16.gmra.mrb[0].mxu0 %v296
      %v424 = vpop.f32.mrb[0].mxu0
      %v425 = vadd.f32 %v228, %v424
      %v426 = vpop.f32.mrb[0].mxu0
      %v427 = vpop.f32.mrb[0].mxu0
      %v428 = vadd.f32 %v228, %v427
      %v429 = vpop.f32.mrb[0].mxu0
      %430 = vmatprep.mubr.bf16.mxu0 0
      %431 = vmatmul.mubr.bf16.gmra.mrb[0].mxu0 %v297
      %v432 = vpop.f32.mrb[0].mxu0
      %v433 = vadd.f32 %v228, %v432
      %v434 = vpop.f32.mrb[0].mxu0
      %v435 = vpop.f32.mrb[0].mxu0
      %v436 = vadd.f32 %v228, %v435
      %v437 = vpop.f32.mrb[0].mxu0
      %438 = vmatprep.mubr.bf16.mxu0 0
      %439 = vmatmul.mubr.bf16.gmra.mrb[0].mxu0 %v298
      %v440 = vpop.f32.mrb[0].mxu0
      %v441 = vadd.f32 %v228, %v440
      %v442 = vpop.f32.mrb[0].mxu0
      %v443 = vpop.f32.mrb[0].mxu0
      %v444 = vadd.f32 %v228, %v443
      %v445 = vpop.f32.mrb[0].mxu0
      %446 = vmatprep.mubr.bf16.mxu0 0
      %447 = vmatmul.mubr.bf16.gmra.mrb[0].mxu0 %v299
      %v448 = vpop.f32.mrb[0].mxu0
      %v449 = vadd.f32 %v228, %v448
      %v450 = vpop.f32.mrb[0].mxu0
      %v451 = vpop.f32.mrb[0].mxu0
      %v452 = vadd.f32 %v228, %v451
      %v453 = vpop.f32.mrb[0].mxu0
      %454 = vmatprep.mubr.bf16.mxu0 0
      %455 = vmatmul.mubr.bf16.gmra.mrb[0].mxu0 %v300
      %v456 = vpop.f32.mrb[0].mxu0
      %v457 = vadd.f32 %v228, %v456
      %v458 = vpop.f32.mrb[0].mxu0
      %v459 = vpop.f32.mrb[0].mxu0
      %v460 = vadd.f32 %v228, %v459
      %v461 = vpop.f32.mrb[0].mxu0
      %462 = vmatprep.mubr.bf16.mxu0 0
      %463 = vmatmul.mubr.bf16.gmra.mrb[0].mxu0 %v301
      %v464 = vpop.f32.mrb[0].mxu0
      %v465 = vadd.f32 %v228, %v464
      %v466 = vpop.f32.mrb[0].mxu0
      %v467 = vpop.f32.mrb[0].mxu0
      %v468 = vadd.f32 %v228, %v467
      %v469 = vpop.f32.mrb[0].mxu0
      %470 = vmatprep.mubr.bf16.mxu0 0
      %471 = vmatmul.mubr.bf16.gmra.mrb[0].mxu0 %v302
      %v472 = vpop.f32.mrb[0].mxu0
      %v473 = vadd.f32 %v228, %v472
      %v474 = vpop.f32.mrb[0].mxu0
      %v475 = vpop.f32.mrb[0].mxu0
      %v476 = vadd.f32 %v228, %v475
      %v477 = vpop.f32.mrb[0].mxu0
      %478 = vmatprep.mubr.bf16.mxu0 0
      %479 = vmatmul.mubr.bf16.gmra.mrb[0].mxu0 %v303
      %v480 = vpop.f32.mrb[0].mxu0
      %v481 = vadd.f32 %v228, %v480
      %v482 = vpop.f32.mrb[0].mxu0
      %v483 = vpop.f32.mrb[0].mxu0
      %v484 = vadd.f32 %v228, %v483
      %v485 = vpop.f32.mrb[0].mxu0
      %486 = vmatprep.mubr.bf16.mxu0 0
      %487 = vmatmul.mubr.bf16.gmra.mrb[0].mxu0 %v304
      %v488 = vpop.f32.mrb[0].mxu0
      %v489 = vadd.f32 %v228, %v488
      %v490 = vpop.f32.mrb[0].mxu0
      %v491 = vpop.f32.mrb[0].mxu0
      %v492 = vadd.f32 %v228, %v491
      %v493 = vpop.f32.mrb[0].mxu0
      %494 = vmatprep.mubr.bf16.mxu0 0
      %495 = vmatmul.mubr.bf16.gmra.mrb[0].mxu0 %v305
      %v496 = vpop.f32.mrb[0].mxu0
      %v497 = vadd.f32 %v228, %v496
      %v498 = vpop.f32.mrb[0].mxu0
      %v499 = vpop.f32.mrb[0].mxu0
      %v500 = vadd.f32 %v228, %v499
      %v501 = vpop.f32.mrb[0].mxu0
      %502 = vmatprep.mubr.bf16.mxu0 0
      %503 = vmatmul.mubr.bf16.gmra.mrb[0].mxu0 %v306
      %v504 = vpop.f32.mrb[0].mxu0
      %v505 = vadd.f32 %v228, %v504
      %v506 = vpop.f32.mrb[0].mxu0
      %v507 = vpop.f32.mrb[0].mxu0
      %v508 = vadd.f32 %v228, %v507
      %v509 = vpop.f32.mrb[0].mxu0
      %510 = vmatprep.mubr.bf16.mxu0 0
      %511 = vmatmul.mubr.bf16.gmra.mrb[0].mxu0 %v307
      %v512 = vpop.f32.mrb[0].mxu0
      %v513 = vadd.f32 %v228, %v512
      %v514 = vpop.f32.mrb[0].mxu0
      %v515 = vpop.f32.mrb[0].mxu0
      %v516 = vadd.f32 %v228, %v515
      %v517 = vpop.f32.mrb[0].mxu0
      %518 = vmatprep.mubr.bf16.mxu0 0
      %519 = vmatmul.mubr.bf16.gmra.mrb[0].mxu0 %v308
      %v520 = vpop.f32.mrb[0].mxu0
      %v521 = vadd.f32 %v228, %v520
      %v522 = vpop.f32.mrb[0].mxu0
      %v523 = vpop.f32.mrb[0].mxu0
      %v524 = vadd.f32 %v228, %v523
      %v525 = vpop.f32.mrb[0].mxu0
      %526 = vmatprep.mubr.bf16.mxu0 0
      %527 = vmatmul.mubr.bf16.gmra.mrb[0].mxu0 %v309
      %v528 = vpop.f32.mrb[0].mxu0
      %v529 = vadd.f32 %v228, %v528
      %v530 = vpop.f32.mrb[0].mxu0
      %v531 = vpop.f32.mrb[0].mxu0
      %v532 = vadd.f32 %v228, %v531
      %v533 = vpop.f32.mrb[0].mxu0
      %534 = vdwg.mxu0
      %v535 = vmax.f32 %v409, 0.0
      %v536 = vmax.f32 %v412, 0.0
      %v537 = vmax.f32 %v417, 0.0
      %v538 = vmax.f32 %v420, 0.0
      %v539 = vmax.f32 %v425, 0.0
      %v540 = vmax.f32 %v428, 0.0
      %v541 = vmax.f32 %v433, 0.0
      %v542 = vmax.f32 %v436, 0.0
      %v543 = vmax.f32 %v441, 0.0
      %v544 = vmax.f32 %v444, 0.0
      %v545 = vmax.f32 %v449, 0.0
      %v546 = vmax.f32 %v452, 0.0
      %v547 = vmax.f32 %v457, 0.0
      %v548 = vmax.f32 %v460, 0.0
      %v549 = vmax.f32 %v465, 0.0
      %v550 = vmax.f32 %v468, 0.0
      %v551 = vmax.f32 %v473, 0.0
      %v552 = vmax.f32 %v476, 0.0
      %v553 = vmax.f32 %v481, 0.0
      %v554 = vmax.f32 %v484, 0.0
      %v555 = vmax.f32 %v489, 0.0
      %v556 = vmax.f32 %v492, 0.0
      %v557 = vmax.f32 %v497, 0.0
      %v558 = vmax.f32 %v500, 0.0
      %v559 = vmax.f32 %v505, 0.0
      %v560 = vmax.f32 %v508, 0.0
      %v561 = vmax.f32 %v513, 0.0
      %v562 = vmax.f32 %v516, 0.0
      %v563 = vmax.f32 %v521, 0.0
      %v564 = vmax.f32 %v524, 0.0
      %v565 = vmax.f32 %v529, 0.0
      %v566 = vmax.f32 %v532, 0.0
      %v567 = vpack.c.bf16 %v536, %v535
      %v568 = vpack.c.bf16 %v538, %v537
      %v569 = vpack.c.bf16 %v540, %v539
      %v570 = vpack.c.bf16 %v542, %v541
      %v571 = vpack.c.bf16 %v544, %v543
      %v572 = vpack.c.bf16 %v546, %v545
      %v573 = vpack.c.bf16 %v548, %v547
      %v574 = vpack.c.bf16 %v550, %v549
      %v575 = vpack.c.bf16 %v552, %v551
      %v576 = vpack.c.bf16 %v554, %v553
      %v577 = vpack.c.bf16 %v556, %v555
      %v578 = vpack.c.bf16 %v558, %v557
      %v579 = vpack.c.bf16 %v560, %v559
      %v580 = vpack.c.bf16 %v562, %v561
      %v581 = vpack.c.bf16 %v564, %v563
      %v582 = vpack.c.bf16 %v566, %v565
      %v599 = vunpack.c.l.b16 %v567
      %v600 = vunpack.c.h.b16 %v567
      %v601 = vunpack.c.l.b16 %v568
      %v602 = vunpack.c.h.b16 %v568
      %v603 = vunpack.c.l.b16 %v569
      %v604 = vunpack.c.h.b16 %v569
      %v605 = vunpack.c.l.b16 %v570
      %v606 = vunpack.c.h.b16 %v570
      %v607 = vunpack.c.l.b16 %v571
      %v608 = vunpack.c.h.b16 %v571
      %v609 = vunpack.c.l.b16 %v572
      %v610 = vunpack.c.h.b16 %v572
      %v611 = vunpack.c.l.b16 %v573
      %v612 = vunpack.c.h.b16 %v573
      %v613 = vunpack.c.l.b16 %v574
      %v614 = vunpack.c.h.b16 %v574
      %v615 = vunpack.c.l.b16 %v575
      %v616 = vunpack.c.h.b16 %v575
      %v617 = vunpack.c.l.b16 %v576
      %v618 = vunpack.c.h.b16 %v576
      %v619 = vunpack.c.l.b16 %v577
      %v620 = vunpack.c.h.b16 %v577
      %v621 = vunpack.c.l.b16 %v578
      %v622 = vunpack.c.h.b16 %v578
      %v623 = vunpack.c.l.b16 %v579
      %v624 = vunpack.c.h.b16 %v579
      %v625 = vunpack.c.l.b16 %v580
      %v626 = vunpack.c.h.b16 %v580
      %v627 = vunpack.c.l.b16 %v581
      %v628 = vunpack.c.h.b16 %v581
      %v629 = vunpack.c.l.b16 %v582
      %v630 = vunpack.c.h.b16 %v582
      %v631 = vpack.c.b16 %v599, %v599
      %v632 = vpack.c.b16 %v600, %v600
      %v633 = vpack.c.b16 %v601, %v601
      %v634 = vpack.c.b16 %v602, %v602
      %v635 = vpack.c.b16 %v603, %v603
      %v636 = vpack.c.b16 %v604, %v604
      %v637 = vpack.c.b16 %v605, %v605
      %v638 = vpack.c.b16 %v606, %v606
      %v639 = vpack.c.b16 %v607, %v607
      %v640 = vpack.c.b16 %v608, %v608
      %v641 = vpack.c.b16 %v609, %v609
      %v642 = vpack.c.b16 %v610, %v610
      %v643 = vpack.c.b16 %v611, %v611
      %v644 = vpack.c.b16 %v612, %v612
      %v645 = vpack.c.b16 %v613, %v613
      %v646 = vpack.c.b16 %v614, %v614
      %v647 = vpack.c.b16 %v615, %v615
      %v648 = vpack.c.b16 %v616, %v616
      %v649 = vpack.c.b16 %v617, %v617
      %v650 = vpack.c.b16 %v618, %v618
      %v651 = vpack.c.b16 %v619, %v619
      %v652 = vpack.c.b16 %v620, %v620
      %v653 = vpack.c.b16 %v621, %v621
      %v654 = vpack.c.b16 %v622, %v622
      %v655 = vpack.c.b16 %v623, %v623
      %v656 = vpack.c.b16 %v624, %v624
      %v657 = vpack.c.b16 %v625, %v625
      %v658 = vpack.c.b16 %v626, %v626
      %v659 = vpack.c.b16 %v627, %v627
      %v660 = vpack.c.b16 %v628, %v628
      %v661 = vpack.c.b16 %v629, %v629
      %v662 = vpack.c.b16 %v630, %v630
      %695 = vst [vmem:[%s172] sm:$0xf] %v631
      %696 = vst [vmem:[%s172 + $0x4] sm:$0xf] %v632
      %697 = vst [vmem:[%s172 + $0x8] sm:$0xf] %v633
      %698 = vst [vmem:[%s172 + $0xc] sm:$0xf] %v634
      %699 = vst [vmem:[%s172 + $0x10] sm:$0xf] %v635
      %700 = vst [vmem:[%s172 + $0x14] sm:$0xf] %v636
      %701 = vst [vmem:[%s172 + $0x18] sm:$0xf] %v637
      %702 = vst [vmem:[%s172 + $0x1c] sm:$0xf] %v638
      %703 = vst [vmem:[%s172 + $0x20] sm:$0xf] %v639
      %704 = vst [vmem:[%s172 + $0x24] sm:$0xf] %v640
      %705 = vst [vmem:[%s172 + $0x28] sm:$0xf] %v641
      %706 = vst [vmem:[%s172 + $0x2c] sm:$0xf] %v642
      %707 = vst [vmem:[%s172 + $0x30] sm:$0xf] %v643
      %708 = vst [vmem:[%s172 + $0x34] sm:$0xf] %v644
      %709 = vst [vmem:[%s172 + $0x38] sm:$0xf] %v645
      %710 = vst [vmem:[%s172 + $0x3c] sm:$0xf] %v646
      %711 = vst [vmem:[%s172 + $0x40] sm:$0xf] %v647
      %712 = vst [vmem:[%s172 + $0x44] sm:$0xf] %v648
      %713 = vst [vmem:[%s172 + $0x48] sm:$0xf] %v649
      %714 = vst [vmem:[%s172 + $0x4c] sm:$0xf] %v650
      %715 = vst [vmem:[%s172 + $0x50] sm:$0xf] %v651
      %716 = vst [vmem:[%s172 + $0x54] sm:$0xf] %v652
      %717 = vst [vmem:[%s172 + $0x58] sm:$0xf] %v653
      %718 = vst [vmem:[%s172 + $0x5c] sm:$0xf] %v654
      %719 = vst [vmem:[%s172 + $0x60] sm:$0xf] %v655
      %720 = vst [vmem:[%s172 + $0x64] sm:$0xf] %v656
      %721 = vst [vmem:[%s172 + $0x68] sm:$0xf] %v657
      %722 = vst [vmem:[%s172 + $0x6c] sm:$0xf] %v658
      %723 = vst [vmem:[%s172 + $0x70] sm:$0xf] %v659
      %724 = vst [vmem:[%s172 + $0x74] sm:$0xf] %v660
      %725 = vst [vmem:[%s172 + $0x78] sm:$0xf] %v661
      %726 = vst [vmem:[%s172 + $0x7c] sm:$0xf] %v662
      %s727 = smul.u32 32, %s14
      %p728 = scmp.lt.s32.totalorder %s727, 63
      %s729 = scalar_select %p728, %s727, 63
      %s730 = smul.addr %s729, 4
      %s731 = scalar_lea.vmem %s3, %s730
      // Predicated region
      $region33: #{basic_block_forward.2} parent=31 // pred_check
        %p732 = pneg %p100
      $region34: #{basic_block_forward.2} parent=31 // pred_check_branch
        %734 = sbr.rel (%p732) target = $region36
      $region35: #{basic_block_forward.2} parent=31 // pred_region
        %s735 = smul.u32 32, %s14
      $region36: #{basic_block_forward.2} parent=31 // pred_fallthru
        _
    $region32: #{basic_block_forward.2} parent=5 // pred_fallthru
      _
    %p736 = scmp.le.s32.totalorder 2, %s9
    // Predicated region
    $region37: #{basic_block_forward.2} parent=5 // pred_check
      %p737 = pneg %p736
    $region38: #{basic_block_forward.2} parent=5 // pred_check_branch
      %739 = sbr.rel (%p737) target = $region40
    $region39: #{basic_block_forward.2} parent=5 // pred_region
      %s740 = ssub.s32 %s9, 2
      // Predicated region
      $region41: #{basic_block_forward.2} parent=39 // pred_check
        %p741 = pneg %p106
      $region42: #{basic_block_forward.2} parent=39 // pred_check_branch
        %743 = sbr.rel (%p741) target = $region44
      $region43: #{basic_block_forward.2} parent=39 // pred_region
        %s744 = smul.u32 32, %s15
        %p745 = scmp.lt.s32.totalorder %s744, 63
        %s746 = scalar_select %p745, %s744, 63
        %s747 = smul.addr %s746, 4
        %s748 = scalar_lea.vmem %s3, %s747
      $region44: #{basic_block_forward.2} parent=39 // pred_fallthru
        _
    $region40: #{basic_block_forward.2} parent=5 // pred_fallthru
      _
  $region6: #{basic_block_forward.2} parent=0 // loop_footer
    %s13 = sadd.s32 1, %s9
  $region7: #{basic_block_forward.2} parent=0 // loop_footer_branch
    %8 = sbr.rel target = $region3
  $region8: #{basic_block_forward.2} parent=0 // loop_exit
    _

// kernel: basic_block_forward.3
$region0: #{basic_block_forward.3}
  #allocation0 [shape = 'u32[]', space=smem, size = 0x4, offset = 0x4, fixed_abs, tag = 'smem constant byte address 0x4 - core index']
  #allocation1 [shape = 'u32[144,128]{1,0:T(1,128)}', space=vmem, size = 0x12000, scoped, tag = 'internal scratch']
  %s0 = inlined_call_operand.vmem [shape: bf16[512,128], index: 0, kind: input, shape index: {}]
  %s1 = inlined_call_operand.vmem [shape: bf16[128,128], index: 1, kind: input, shape index: {}]
  %s2 = inlined_call_operand.vmem [shape: f32[1,128], index: 2, kind: input, shape index: {}]
  %s3 = inlined_call_operand.vmem [shape: bf16[512,128], index: 3, kind: input, shape index: {}]
  %s4 = inlined_call_operand.vmem [shape: bf16[512,128], index: 4, kind: output, shape index: {}]
  %s5 = sld [smem:[#allocation0]]
  $region49: #{basic_block_forward.3} parent=0
    _
  %s7 = ssub.s32 1, %s5
  %s8 = scalar_select 0, %s7, %s5
  loop: start=0, step=1, limit=4
  $region2: #{basic_block_forward.3} parent=0 // loop_pre_header
    _
  $region3: #{basic_block_forward.3} parent=0 // loop_header
    %s10 = sphi 0, %s14
    %p11 = scmp.ge.s32.totalorder %s10, 4
    %s20 = sphi 0, %s22
    %s23 = sphi 0, %s20
    %s24 = sphi 0, %s23
    %s40 = sphi 0, %s24
    %s44 = sphi 0, %s44
    %s46 = sphi 0, %s44
    %s47 = sphi 0, %s46
    %s61 = sphi 0, %s47
    %s65 = sphi 0, %s65
    %s67 = sphi 0, %s65
    %s68 = sphi 0, %s67
    %s82 = sphi 0, %s68
    %s88 = sphi 0, %s90
    %s91 = sphi 0, %s88
    %s92 = sphi 0, %s91
    %s108 = sphi 0, %s92
    %s114 = sphi 0, %s116
    %s117 = sphi 0, %s114
    %s118 = sphi 0, %s117
    %s134 = sphi 0, %s118
  $region4: #{basic_block_forward.3} parent=0 // loop_header_branch
    %13 = sbr.rel (%p11) target = $region8
  $region5: #{basic_block_forward.3} parent=0 // loop_body
    %s15 = ssub.s32 %s10, 1
    %s16 = ssub.s32 %s10, 2
    %s17 = sadd.s32 %s10, 1
    %s18 = ssub.s32 %s10, %s17
    %p19 = scmp.eq.s32.totalorder %s18, 0
    %s21 = sadd.s32 %s20, 1
    %s22 = scalar_select %p19, %s20, %s21
    %p25 = pneg %p19
    %p26 = scmp.eq.s32.totalorder %s10, 1
    %p27 = por %p25, %p26
    %p28 = scmp.ne.s32.totalorder %s20, %s23
    %p29 = scmp.eq.s32.totalorder %s10, 0
    %p30 = por %p28, %p29
    %p31 = scmp.ne.s32.totalorder %s20, %s23
    %p32 = scmp.eq.s32.totalorder %s15, 1
    %p33 = por %p31, %p32
    %p34 = scmp.ne.s32.totalorder %s23, %s24
    %p35 = scmp.eq.s32.totalorder %s15, 0
    %p36 = por %p34, %p35
    %p37 = scmp.ne.s32.totalorder %s23, %s24
    %p38 = scmp.eq.s32.totalorder %s16, 1
    %p39 = por %p37, %p38
    %p41 = scmp.ne.s32.totalorder %s24, %s40
    %p42 = scmp.eq.s32.totalorder %s16, 0
    %p43 = por %p41, %p42
    %s45 = sadd.s32 %s44, 1
    %p48 = scmp.eq.s32.totalorder %s10, 1
    %p49 = scmp.ne.s32.totalorder %s44, %s46
    %p50 = scmp.eq.s32.totalorder %s10, 0
    %p51 = por %p49, %p50
    %p52 = scmp.ne.s32.totalorder %s44, %s46
    %p53 = scmp.eq.s32.totalorder %s15, 1
    %p54 = por %p52, %p53
    %p55 = scmp.ne.s32.totalorder %s46, %s47
    %p56 = scmp.eq.s32.totalorder %s15, 0
    %p57 = por %p55, %p56
    %p58 = scmp.ne.s32.totalorder %s46, %s47
    %p59 = scmp.eq.s32.totalorder %s16, 1
    %p60 = por %p58, %p59
    %p62 = scmp.ne.s32.totalorder %s47, %s61
    %p63 = scmp.eq.s32.totalorder %s16, 0
    %p64 = por %p62, %p63
    %s66 = sadd.s32 %s65, 1
    %p69 = scmp.eq.s32.totalorder %s10, 1
    %p70 = scmp.ne.s32.totalorder %s65, %s67
    %p71 = scmp.eq.s32.totalorder %s10, 0
    %p72 = por %p70, %p71
    %p73 = scmp.ne.s32.totalorder %s65, %s67
    %p74 = scmp.eq.s32.totalorder %s15, 1
    %p75 = por %p73, %p74
    %p76 = scmp.ne.s32.totalorder %s67, %s68
    %p77 = scmp.eq.s32.totalorder %s15, 0
    %p78 = por %p76, %p77
    %p79 = scmp.ne.s32.totalorder %s67, %s68
    %p80 = scmp.eq.s32.totalorder %s16, 1
    %p81 = por %p79, %p80
    %p83 = scmp.ne.s32.totalorder %s68, %s82
    %p84 = scmp.eq.s32.totalorder %s16, 0
    %p85 = por %p83, %p84
    %s86 = ssub.s32 %s10, %s17
    %p87 = scmp.eq.s32.totalorder %s86, 0
    %s89 = sadd.s32 %s88, 1
    %s90 = scalar_select %p87, %s88, %s89
    %p93 = pneg %p87
    %p94 = scmp.eq.s32.totalorder %s10, 1
    %p95 = por %p93, %p94
    %p96 = scmp.ne.s32.totalorder %s88, %s91
    %p97 = scmp.eq.s32.totalorder %s10, 0
    %p98 = por %p96, %p97
    %p99 = scmp.ne.s32.totalorder %s88, %s91
    %p100 = scmp.eq.s32.totalorder %s15, 1
    %p101 = por %p99, %p100
    %p102 = scmp.ne.s32.totalorder %s91, %s92
    %p103 = scmp.eq.s32.totalorder %s15, 0
    %p104 = por %p102, %p103
    %p105 = scmp.ne.s32.totalorder %s91, %s92
    %p106 = scmp.eq.s32.totalorder %s16, 1
    %p107 = por %p105, %p106
    %p109 = scmp.ne.s32.totalorder %s92, %s108
    %p110 = scmp.eq.s32.totalorder %s16, 0
    %p111 = por %p109, %p110
    %s112 = ssub.s32 %s10, %s17
    %p113 = scmp.eq.s32.totalorder %s112, 0
    %s115 = sadd.s32 %s114, 1
    %s116 = scalar_select %p113, %s114, %s115
    %p119 = pneg %p113
    %p120 = scmp.eq.s32.totalorder %s10, 1
    %p121 = por %p119, %p120
    %p122 = scmp.ne.s32.totalorder %s114, %s117
    %p123 = scmp.eq.s32.totalorder %s10, 0
    %p124 = por %p122, %p123
    %p125 = scmp.ne.s32.totalorder %s114, %s117
    %p126 = scmp.eq.s32.totalorder %s15, 1
    %p127 = por %p125, %p126
    %p128 = scmp.ne.s32.totalorder %s117, %s118
    %p129 = scmp.eq.s32.totalorder %s15, 0
    %p130 = por %p128, %p129
    %p131 = scmp.ne.s32.totalorder %s117, %s118
    %p132 = scmp.eq.s32.totalorder %s16, 1
    %p133 = por %p131, %p132
    %p135 = scmp.ne.s32.totalorder %s118, %s134
    %p136 = scmp.eq.s32.totalorder %s16, 0
    %p137 = por %p135, %p136
    %p138 = scmp.le.s32.totalorder 1, %s10
    %p139 = scmp.lt.s32.totalorder %s10, 3
    %p140 = pnand %p138, %p139
    %p141 = pneg %p140
    // Predicated region
    $region9: #{basic_block_forward.3} parent=5 // pred_check
      _
    $region10: #{basic_block_forward.3} parent=5 // pred_check_branch
      %143 = sbr.rel (%p140) target = $region12
    $region11: #{basic_block_forward.3} parent=5 // pred_region
      %s144 = ssub.s32 %s10, 1
      // Predicated region
      $region13: #{basic_block_forward.3} parent=11 // pred_check
        %p145 = pneg %p57
      $region14: #{basic_block_forward.3} parent=11 // pred_check_branch
        %147 = sbr.rel (%p145) target = $region16
      $region15: #{basic_block_forward.3} parent=11 // pred_region
        _
      $region16: #{basic_block_forward.3} parent=11 // pred_fallthru
        _
      // Predicated region
      $region17: #{basic_block_forward.3} parent=11 // pred_check
        %p148 = pneg %p78
      $region18: #{basic_block_forward.3} parent=11 // pred_check_branch
        %150 = sbr.rel (%p148) target = $region20
      $region19: #{basic_block_forward.3} parent=11 // pred_region
        _
      $region20: #{basic_block_forward.3} parent=11 // pred_fallthru
        _
    $region12: #{basic_block_forward.3} parent=5 // pred_fallthru
      _
    %p151 = scmp.lt.s32.totalorder %s10, 2
    // Predicated region
    $region21: #{basic_block_forward.3} parent=5 // pred_check
      %p152 = pneg %p151
    $region22: #{basic_block_forward.3} parent=5 // pred_check_branch
      %154 = sbr.rel (%p152) target = $region24
    $region23: #{basic_block_forward.3} parent=5 // pred_region
      // Predicated region
      $region25: #{basic_block_forward.3} parent=23 // pred_check
        %p155 = pneg %p30
      $region26: #{basic_block_forward.3} parent=23 // pred_check_branch
        %157 = sbr.rel (%p155) target = $region28
      $region27: #{basic_block_forward.3} parent=23 // pred_region
        %s158 = smul.u32 32, %s10
        %p159 = scmp.lt.s32.totalorder %s158, 63
        %s160 = scalar_select %p159, %s158, 63
        %s161 = smul.addr %s160, 4
        %s162 = scalar_lea.vmem %s0, %s161
        %s163 = smul.u32 32, %s10
      $region28: #{basic_block_forward.3} parent=23 // pred_fallthru
        _
      // Predicated region
      $region29: #{basic_block_forward.3} parent=23 // pred_check
        %p164 = pneg %p98
      $region30: #{basic_block_forward.3} parent=23 // pred_check_branch
        %166 = sbr.rel (%p164) target = $region32
      $region31: #{basic_block_forward.3} parent=23 // pred_region
        %s167 = smul.u32 32, %s10
        %p168 = scmp.lt.s32.totalorder %s167, 63
        %s169 = scalar_select %p168, %s167, 63
        %s170 = smul.addr %s169, 4
        %s171 = scalar_lea.vmem %s3, %s170
        %s172 = smul.u32 32, %s10
      $region32: #{basic_block_forward.3} parent=23 // pred_fallthru
        _
    $region24: #{basic_block_forward.3} parent=5 // pred_fallthru
      _
    %p173 = scmp.le.s32.totalorder 1, %s10
    %p174 = scmp.lt.s32.totalorder %s10, 3
    %p175 = pnand %p173, %p174
    %p176 = pneg %p175
    // Predicated region
    $region33: #{basic_block_forward.3} parent=5 // pred_check
      _
    $region34: #{basic_block_forward.3} parent=5 // pred_check_branch
      %178 = sbr.rel (%p175) target = $region36
    $region35: #{basic_block_forward.3} parent=5 // pred_region
      %s179 = ssub.s32 %s10, 1
      %s180 = smul.u32 32, %s15
      %p181 = scmp.lt.s32.totalorder %s180, 63
      %s182 = scalar_select %p181, %s180, 63
      %s183 = smul.addr %s182, 4
      %s184 = scalar_lea.vmem %s0, %s183
      %p185 = pneg %p36
      %p186 = pneg %p33
      %p187 = pneg %p57
      %p188 = pneg %p54
      %p189 = pneg %p78
      %p190 = pneg %p75
      %s191 = smul.u32 32, %s15
      %p192 = scmp.lt.s32.totalorder %s191, 63
      %s193 = scalar_select %p192, %s191, 63
      %s194 = smul.addr %s193, 4
      %s195 = scalar_lea.vmem %s3, %s194
      %p196 = pneg %p104
      %p197 = pneg %p101
      %p198 = pneg %p130
      %p199 = pneg %p127
      %s200 = smul.u32 32, %s15
      %p201 = scmp.lt.s32.totalorder %s200, 63
      %s202 = scalar_select %p201, %s200, 63
      %s203 = smul.addr %s202, 4
      %s204 = scalar_lea.vmem %s4, %s203
      %s205 = smul.u32 32, %s15
      %p206 = scmp.lt.s32.totalorder %s205, 63
      %s207 = scalar_select %p206, %s205, 63
      %s208 = smul.addr %s207, 4
      %s209 = scalar_lea.vmem %s0, %s208
      %s210 = smul.u32 32, %s15
      %s211 = smul.u32 32, %s15
      %p212 = scmp.lt.s32.totalorder %s211, 63
      %s213 = scalar_select %p212, %s211, 63
      %s214 = smul.addr %s213, 4
      %s215 = scalar_lea.vmem %s3, %s214
      %s216 = smul.u32 32, %s15
      %s217 = smul.u32 32, %s15
      %p218 = scmp.lt.s32.totalorder %s217, 63
      %s219 = scalar_select %p218, %s217, 63
      %s220 = smul.addr %s219, 4
      %s221 = scalar_lea.vmem %s4, %s220
      %s222 = smul.u32 32, %s15
      %v224 = vld [vmem:[%s209] sm:$0xf]
      %v225 = vld [vmem:[%s209 + $0x4] sm:$0xf]
      %v226 = vld [vmem:[%s209 + $0x8] sm:$0xf]
      %v227 = vld [vmem:[%s209 + $0xc] sm:$0xf]
      %v228 = vld [vmem:[%s209 + $0x10] sm:$0xf]
      %v229 = vld [vmem:[%s209 + $0x14] sm:$0xf]
      %v230 = vld [vmem:[%s209 + $0x18] sm:$0xf]
      %v231 = vld [vmem:[%s209 + $0x1c] sm:$0xf]
      %v232 = vld [vmem:[%s209 + $0x20] sm:$0xf]
      %v233 = vld [vmem:[%s209 + $0x24] sm:$0xf]
      %v234 = vld [vmem:[%s209 + $0x28] sm:$0xf]
      %v235 = vld [vmem:[%s209 + $0x2c] sm:$0xf]
      %v236 = vld [vmem:[%s209 + $0x30] sm:$0xf]
      %v237 = vld [vmem:[%s209 + $0x34] sm:$0xf]
      %v238 = vld [vmem:[%s209 + $0x38] sm:$0xf]
      %v239 = vld [vmem:[%s209 + $0x3c] sm:$0xf]
      %v240 = vld [vmem:[%s209 + $0x40] sm:$0xf]
      %v241 = vld [vmem:[%s209 + $0x44] sm:$0xf]
      %v242 = vld [vmem:[%s209 + $0x48] sm:$0xf]
      %v243 = vld [vmem:[%s209 + $0x4c] sm:$0xf]
      %v244 = vld [vmem:[%s209 + $0x50] sm:$0xf]
      %v245 = vld [vmem:[%s209 + $0x54] sm:$0xf]
      %v246 = vld [vmem:[%s209 + $0x58] sm:$0xf]
      %v247 = vld [vmem:[%s209 + $0x5c] sm:$0xf]
      %v248 = vld [vmem:[%s209 + $0x60] sm:$0xf]
      %v249 = vld [vmem:[%s209 + $0x64] sm:$0xf]
      %v250 = vld [vmem:[%s209 + $0x68] sm:$0xf]
      %v251 = vld [vmem:[%s209 + $0x6c] sm:$0xf]
      %v252 = vld [vmem:[%s209 + $0x70] sm:$0xf]
      %v253 = vld [vmem:[%s209 + $0x74] sm:$0xf]
      %v254 = vld [vmem:[%s209 + $0x78] sm:$0xf]
      %v255 = vld [vmem:[%s209 + $0x7c] sm:$0xf]
      %v256 = vld [vmem:[%s1] sm:$0xf]
      %v257 = vld [vmem:[%s1 + $0x4] sm:$0xf]
      %v258 = vld [vmem:[%s1 + $0x8] sm:$0xf]
      %v259 = vld [vmem:[%s1 + $0xc] sm:$0xf]
      %v260 = vld [vmem:[%s1 + $0x10] sm:$0xf]
      %v261 = vld [vmem:[%s1 + $0x14] sm:$0xf]
      %v262 = vld [vmem:[%s1 + $0x18] sm:$0xf]
      %v263 = vld [vmem:[%s1 + $0x1c] sm:$0xf]
      %v264 = vld [vmem:[%s1 + $0x20] sm:$0xf]
      %v265 = vld [vmem:[%s1 + $0x24] sm:$0xf]
      %v266 = vld [vmem:[%s1 + $0x28] sm:$0xf]
      %v267 = vld [vmem:[%s1 + $0x2c] sm:$0xf]
      %v268 = vld [vmem:[%s1 + $0x30] sm:$0xf]
      %v269 = vld [vmem:[%s1 + $0x34] sm:$0xf]
      %v270 = vld [vmem:[%s1 + $0x38] sm:$0xf]
      %v271 = vld [vmem:[%s1 + $0x3c] sm:$0xf]
      %v272 = vld [vmem:[%s2] sm:$0x1]
      %v274 = vlaneseq
      %v275 = vshrl.u32 %v274, 7
      %v276 = vsub.s32 0, %v275
      %v277 = vrot.slane %v272, %v276
      %v311 = vunpack.c.l.b16 %v224
      %v312 = vunpack.c.l.b16 %v225
      %v313 = vunpack.c.l.b16 %v226
      %v314 = vunpack.c.l.b16 %v227
      %v315 = vunpack.c.l.b16 %v228
      %v316 = vunpack.c.l.b16 %v229
      %v317 = vunpack.c.l.b16 %v230
      %v318 = vunpack.c.l.b16 %v231
      %v319 = vunpack.c.l.b16 %v232
      %v320 = vunpack.c.l.b16 %v233
      %v321 = vunpack.c.l.b16 %v234
      %v322 = vunpack.c.l.b16 %v235
      %v323 = vunpack.c.l.b16 %v236
      %v324 = vunpack.c.l.b16 %v237
      %v325 = vunpack.c.l.b16 %v238
      %v326 = vunpack.c.l.b16 %v239
      %v327 = vunpack.c.l.b16 %v240
      %v328 = vunpack.c.l.b16 %v241
      %v329 = vunpack.c.l.b16 %v242
      %v330 = vunpack.c.l.b16 %v243
      %v331 = vunpack.c.l.b16 %v244
      %v332 = vunpack.c.l.b16 %v245
      %v333 = vunpack.c.l.b16 %v246
      %v334 = vunpack.c.l.b16 %v247
      %v335 = vunpack.c.l.b16 %v248
      %v336 = vunpack.c.l.b16 %v249
      %v337 = vunpack.c.l.b16 %v250
      %v338 = vunpack.c.l.b16 %v251
      %v339 = vunpack.c.l.b16 %v252
      %v340 = vunpack.c.l.b16 %v253
      %v341 = vunpack.c.l.b16 %v254
      %v342 = vunpack.c.l.b16 %v255
      %v343 = vpack.c.b16 %v312, %v311
      %v344 = vpack.c.b16 %v314, %v313
      %v345 = vpack.c.b16 %v316, %v315
      %v346 = vpack.c.b16 %v318, %v317
      %v347 = vpack.c.b16 %v320, %v319
      %v348 = vpack.c.b16 %v322, %v321
      %v349 = vpack.c.b16 %v324, %v323
      %v350 = vpack.c.b16 %v326, %v325
      %v351 = vpack.c.b16 %v328, %v327
      %v352 = vpack.c.b16 %v330, %v329
      %v353 = vpack.c.b16 %v332, %v331
      %v354 = vpack.c.b16 %v334, %v333
      %v355 = vpack.c.b16 %v336, %v335
      %v356 = vpack.c.b16 %v338, %v337
      %v357 = vpack.c.b16 %v340, %v339
      %v358 = vpack.c.b16 %v342, %v341
      %v391 = vunpack.c.l.b16 %v256
      %v392 = vunpack.c.l.b16 %v257
      %v393 = vunpack.c.l.b16 %v258
      %v394 = vunpack.c.l.b16 %v259
      %v395 = vunpack.c.l.b16 %v260
      %v396 = vunpack.c.l.b16 %v261
      %v397 = vunpack.c.l.b16 %v262
      %v398 = vunpack.c.l.b16 %v263
      %v399 = vunpack.c.l.b16 %v264
      %v400 = vunpack.c.l.b16 %v265
      %v401 = vunpack.c.l.b16 %v266
      %v402 = vunpack.c.l.b16 %v267
      %v403 = vunpack.c.l.b16 %v268
      %v404 = vunpack.c.l.b16 %v269
      %v405 = vunpack.c.l.b16 %v270
      %v406 = vunpack.c.l.b16 %v271
      %v407 = vpack.c.b16 %v392, %v391
      %v408 = vpack.c.b16 %v394, %v393
      %v409 = vpack.c.b16 %v396, %v395
      %v410 = vpack.c.b16 %v398, %v397
      %v411 = vpack.c.b16 %v400, %v399
      %v412 = vpack.c.b16 %v402, %v401
      %v413 = vpack.c.b16 %v404, %v403
      %v414 = vpack.c.b16 %v406, %v405
      %423 = vmatprep.subr.bf16.mxu0 0
      %424 = vmatpush1.bf16.msra.mxu0 %v407
      %425 = vmatprep.subr.bf16.mxu0 0
      %426 = vmatpush1.bf16.msra.mxu0 %v408
      %427 = vmatprep.subr.bf16.mxu0 0
      %428 = vmatpush1.bf16.msra.mxu0 %v409
      %429 = vmatprep.subr.bf16.mxu0 0
      %430 = vmatpush1.bf16.msra.mxu0 %v410
      %431 = vmatprep.subr.bf16.mxu0 0
      %432 = vmatpush1.bf16.msra.mxu0 %v411
      %433 = vmatprep.subr.bf16.mxu0 0
      %434 = vmatpush1.bf16.msra.mxu0 %v412
      %435 = vmatprep.subr.bf16.mxu0 0
      %436 = vmatpush1.bf16.msra.mxu0 %v413
      %437 = vmatprep.subr.bf16.mxu0 0
      %438 = vmatpush1.bf16.msra.mxu0 %v414
      %439 = vmatprep.subr.bf16.mxu0 0
      %440 = vmatpush1.bf16.msra.mxu0 0
      %441 = vmatprep.subr.bf16.mxu0 0
      %442 = vmatpush1.bf16.msra.mxu0 0
      %443 = vmatprep.subr.bf16.mxu0 0
      %444 = vmatpush1.bf16.msra.mxu0 0
      %445 = vmatprep.subr.bf16.mxu0 0
      %446 = vmatpush1.bf16.msra.mxu0 0
      %447 = vmatprep.subr.bf16.mxu0 0
      %448 = vmatpush1.bf16.msra.mxu0 0
      %449 = vmatprep.subr.bf16.mxu0 0
      %450 = vmatpush1.bf16.msra.mxu0 0
      %451 = vmatprep.subr.bf16.mxu0 0
      %452 = vmatpush1.bf16.msra.mxu0 0
      %453 = vmatprep.subr.bf16.mxu0 0
      %454 = vmatpush1.bf16.msra.mxu0 0
      %455 = vmatprep.mubr.bf16.mxu0 0
      %456 = vmatmul.mubr.bf16.gmra.mrb[0].mxu0 %v343
      %v457 = vpop.f32.mrb[0].mxu0
      %v458 = vadd.f32 %v277, %v457
      %v459 = vpop.f32.mrb[0].mxu0
      %v460 = vpop.f32.mrb[0].mxu0
      %v461 = vadd.f32 %v277, %v460
      %v462 = vpop.f32.mrb[0].mxu0
      %463 = vmatprep.mubr.bf16.mxu0 0
      %464 = vmatmul.mubr.bf16.gmra.mrb[0].mxu0 %v344
      %v465 = vpop.f32.mrb[0].mxu0
      %v466 = vadd.f32 %v277, %v465
      %v467 = vpop.f32.mrb[0].mxu0
      %v468 = vpop.f32.mrb[0].mxu0
      %v469 = vadd.f32 %v277, %v468
      %v470 = vpop.f32.mrb[0].mxu0
      %471 = vmatprep.mubr.bf16.mxu0 0
      %472 = vmatmul.mubr.bf16.gmra.mrb[0].mxu0 %v345
      %v473 = vpop.f32.mrb[0].mxu0
      %v474 = vadd.f32 %v277, %v473
      %v475 = vpop.f32.mrb[0].mxu0
      %v476 = vpop.f32.mrb[0].mxu0
      %v477 = vadd.f32 %v277, %v476
      %v478 = vpop.f32.mrb[0].mxu0
      %479 = vmatprep.mubr.bf16.mxu0 0
      %480 = vmatmul.mubr.bf16.gmra.mrb[0].mxu0 %v346
      %v481 = vpop.f32.mrb[0].mxu0
      %v482 = vadd.f32 %v277, %v481
      %v483 = vpop.f32.mrb[0].mxu0
      %v484 = vpop.f32.mrb[0].mxu0
      %v485 = vadd.f32 %v277, %v484
      %v486 = vpop.f32.mrb[0].mxu0
      %487 = vmatprep.mubr.bf16.mxu0 0
      %488 = vmatmul.mubr.bf16.gmra.mrb[0].mxu0 %v347
      %v489 = vpop.f32.mrb[0].mxu0
      %v490 = vadd.f32 %v277, %v489
      %v491 = vpop.f32.mrb[0].mxu0
      %v492 = vpop.f32.mrb[0].mxu0
      %v493 = vadd.f32 %v277, %v492
      %v494 = vpop.f32.mrb[0].mxu0
      %495 = vmatprep.mubr.bf16.mxu0 0
      %496 = vmatmul.mubr.bf16.gmra.mrb[0].mxu0 %v348
      %v497 = vpop.f32.mrb[0].mxu0
      %v498 = vadd.f32 %v277, %v497
      %v499 = vpop.f32.mrb[0].mxu0
      %v500 = vpop.f32.mrb[0].mxu0
      %v501 = vadd.f32 %v277, %v500
      %v502 = vpop.f32.mrb[0].mxu0
      %503 = vmatprep.mubr.bf16.mxu0 0
      %504 = vmatmul.mubr.bf16.gmra.mrb[0].mxu0 %v349
      %v505 = vpop.f32.mrb[0].mxu0
      %v506 = vadd.f32 %v277, %v505
      %v507 = vpop.f32.mrb[0].mxu0
      %v508 = vpop.f32.mrb[0].mxu0
      %v509 = vadd.f32 %v277, %v508
      %v510 = vpop.f32.mrb[0].mxu0
      %511 = vmatprep.mubr.bf16.mxu0 0
      %512 = vmatmul.mubr.bf16.gmra.mrb[0].mxu0 %v350
      %v513 = vpop.f32.mrb[0].mxu0
      %v514 = vadd.f32 %v277, %v513
      %v515 = vpop.f32.mrb[0].mxu0
      %v516 = vpop.f32.mrb[0].mxu0
      %v517 = vadd.f32 %v277, %v516
      %v518 = vpop.f32.mrb[0].mxu0
      %519 = vmatprep.mubr.bf16.mxu0 0
      %520 = vmatmul.mubr.bf16.gmra.mrb[0].mxu0 %v351
      %v521 = vpop.f32.mrb[0].mxu0
      %v522 = vadd.f32 %v277, %v521
      %v523 = vpop.f32.mrb[0].mxu0
      %v524 = vpop.f32.mrb[0].mxu0
      %v525 = vadd.f32 %v277, %v524
      %v526 = vpop.f32.mrb[0].mxu0
      %527 = vmatprep.mubr.bf16.mxu0 0
      %528 = vmatmul.mubr.bf16.gmra.mrb[0].mxu0 %v352
      %v529 = vpop.f32.mrb[0].mxu0
      %v530 = vadd.f32 %v277, %v529
      %v531 = vpop.f32.mrb[0].mxu0
      %v532 = vpop.f32.mrb[0].mxu0
      %v533 = vadd.f32 %v277, %v532
      %v534 = vpop.f32.mrb[0].mxu0
      %535 = vmatprep.mubr.bf16.mxu0 0
      %536 = vmatmul.mubr.bf16.gmra.mrb[0].mxu0 %v353
      %v537 = vpop.f32.mrb[0].mxu0
      %v538 = vadd.f32 %v277, %v537
      %v539 = vpop.f32.mrb[0].mxu0
      %v540 = vpop.f32.mrb[0].mxu0
      %v541 = vadd.f32 %v277, %v540
      %v542 = vpop.f32.mrb[0].mxu0
      %543 = vmatprep.mubr.bf16.mxu0 0
      %544 = vmatmul.mubr.bf16.gmra.mrb[0].mxu0 %v354
      %v545 = vpop.f32.mrb[0].mxu0
      %v546 = vadd.f32 %v277, %v545
      %v547 = vpop.f32.mrb[0].mxu0
      %v548 = vpop.f32.mrb[0].mxu0
      %v549 = vadd.f32 %v277, %v548
      %v550 = vpop.f32.mrb[0].mxu0
      %551 = vmatprep.mubr.bf16.mxu0 0
      %552 = vmatmul.mubr.bf16.gmra.mrb[0].mxu0 %v355
      %v553 = vpop.f32.mrb[0].mxu0
      %v554 = vadd.f32 %v277, %v553
      %v555 = vpop.f32.mrb[0].mxu0
      %v556 = vpop.f32.mrb[0].mxu0
      %v557 = vadd.f32 %v277, %v556
      %v558 = vpop.f32.mrb[0].mxu0
      %559 = vmatprep.mubr.bf16.mxu0 0
      %560 = vmatmul.mubr.bf16.gmra.mrb[0].mxu0 %v356
      %v561 = vpop.f32.mrb[0].mxu0
      %v562 = vadd.f32 %v277, %v561
      %v563 = vpop.f32.mrb[0].mxu0
      %v564 = vpop.f32.mrb[0].mxu0
      %v565 = vadd.f32 %v277, %v564
      %v566 = vpop.f32.mrb[0].mxu0
      %567 = vmatprep.mubr.bf16.mxu0 0
      %568 = vmatmul.mubr.bf16.gmra.mrb[0].mxu0 %v357
      %v569 = vpop.f32.mrb[0].mxu0
      %v570 = vadd.f32 %v277, %v569
      %v571 = vpop.f32.mrb[0].mxu0
      %v572 = vpop.f32.mrb[0].mxu0
      %v573 = vadd.f32 %v277, %v572
      %v574 = vpop.f32.mrb[0].mxu0
      %575 = vmatprep.mubr.bf16.mxu0 0
      %576 = vmatmul.mubr.bf16.gmra.mrb[0].mxu0 %v358
      %v577 = vpop.f32.mrb[0].mxu0
      %v578 = vadd.f32 %v277, %v577
      %v579 = vpop.f32.mrb[0].mxu0
      %v580 = vpop.f32.mrb[0].mxu0
      %v581 = vadd.f32 %v277, %v580
      %v582 = vpop.f32.mrb[0].mxu0
      %583 = vdwg.mxu0
      %v584 = vld [vmem:[%s215] sm:$0xf]
      %v585 = vld [vmem:[%s215 + $0x4] sm:$0xf]
      %v586 = vld [vmem:[%s215 + $0x8] sm:$0xf]
      %v587 = vld [vmem:[%s215 + $0xc] sm:$0xf]
      %v588 = vld [vmem:[%s215 + $0x10] sm:$0xf]
      %v589 = vld [vmem:[%s215 + $0x14] sm:$0xf]
      %v590 = vld [vmem:[%s215 + $0x18] sm:$0xf]
      %v591 = vld [vmem:[%s215 + $0x1c] sm:$0xf]
      %v592 = vld [vmem:[%s215 + $0x20] sm:$0xf]
      %v593 = vld [vmem:[%s215 + $0x24] sm:$0xf]
      %v594 = vld [vmem:[%s215 + $0x28] sm:$0xf]
      %v595 = vld [vmem:[%s215 + $0x2c] sm:$0xf]
      %v596 = vld [vmem:[%s215 + $0x30] sm:$0xf]
      %v597 = vld [vmem:[%s215 + $0x34] sm:$0xf]
      %v598 = vld [vmem:[%s215 + $0x38] sm:$0xf]
      %v599 = vld [vmem:[%s215 + $0x3c] sm:$0xf]
      %v600 = vld [vmem:[%s215 + $0x40] sm:$0xf]
      %v601 = vld [vmem:[%s215 + $0x44] sm:$0xf]
      %v602 = vld [vmem:[%s215 + $0x48] sm:$0xf]
      %v603 = vld [vmem:[%s215 + $0x4c] sm:$0xf]
      %v604 = vld [vmem:[%s215 + $0x50] sm:$0xf]
      %v605 = vld [vmem:[%s215 + $0x54] sm:$0xf]
      %v606 = vld [vmem:[%s215 + $0x58] sm:$0xf]
      %v607 = vld [vmem:[%s215 + $0x5c] sm:$0xf]
      %v608 = vld [vmem:[%s215 + $0x60] sm:$0xf]
      %v609 = vld [vmem:[%s215 + $0x64] sm:$0xf]
      %v610 = vld [vmem:[%s215 + $0x68] sm:$0xf]
      %v611 = vld [vmem:[%s215 + $0x6c] sm:$0xf]
      %v612 = vld [vmem:[%s215 + $0x70] sm:$0xf]
      %v613 = vld [vmem:[%s215 + $0x74] sm:$0xf]
      %v614 = vld [vmem:[%s215 + $0x78] sm:$0xf]
      %v615 = vld [vmem:[%s215 + $0x7c] sm:$0xf]
      %v616 = vunpack.c.l.bf16 %v584
      %v617 = vunpack.c.l.bf16 %v585
      %v618 = vunpack.c.l.bf16 %v586
      %v619 = vunpack.c.l.bf16 %v587
      %v620 = vunpack.c.l.bf16 %v588
      %v621 = vunpack.c.l.bf16 %v589
      %v622 = vunpack.c.l.bf16 %v590
      %v623 = vunpack.c.l.bf16 %v591
      %v624 = vunpack.c.l.bf16 %v592
      %v625 = vunpack.c.l.bf16 %v593
      %v626 = vunpack.c.l.bf16 %v594
      %v627 = vunpack.c.l.bf16 %v595
      %v628 = vunpack.c.l.bf16 %v596
      %v629 = vunpack.c.l.bf16 %v597
      %v630 = vunpack.c.l.bf16 %v598
      %v631 = vunpack.c.l.bf16 %v599
      %v632 = vunpack.c.l.bf16 %v600
      %v633 = vunpack.c.l.bf16 %v601
      %v634 = vunpack.c.l.bf16 %v602
      %v635 = vunpack.c.l.bf16 %v603
      %v636 = vunpack.c.l.bf16 %v604
      %v637 = vunpack.c.l.bf16 %v605
      %v638 = vunpack.c.l.bf16 %v606
      %v639 = vunpack.c.l.bf16 %v607
      %v640 = vunpack.c.l.bf16 %v608
      %v641 = vunpack.c.l.bf16 %v609
      %v642 = vunpack.c.l.bf16 %v610
      %v643 = vunpack.c.l.bf16 %v611
      %v644 = vunpack.c.l.bf16 %v612
      %v645 = vunpack.c.l.bf16 %v613
      %v646 = vunpack.c.l.bf16 %v614
      %v647 = vunpack.c.l.bf16 %v615
      %v648 = vadd.f32 %v458, %v616
      %v649 = vadd.f32 %v461, %v617
      %v650 = vadd.f32 %v466, %v618
      %v651 = vadd.f32 %v469, %v619
      %v652 = vadd.f32 %v474, %v620
      %v653 = vadd.f32 %v477, %v621
      %v654 = vadd.f32 %v482, %v622
      %v655 = vadd.f32 %v485, %v623
      %v656 = vadd.f32 %v490, %v624
      %v657 = vadd.f32 %v493, %v625
      %v658 = vadd.f32 %v498, %v626
      %v659 = vadd.f32 %v501, %v627
      %v660 = vadd.f32 %v506, %v628
      %v661 = vadd.f32 %v509, %v629
      %v662 = vadd.f32 %v514, %v630
      %v663 = vadd.f32 %v517, %v631
      %v664 = vadd.f32 %v522, %v632
      %v665 = vadd.f32 %v525, %v633
      %v666 = vadd.f32 %v530, %v634
      %v667 = vadd.f32 %v533, %v635
      %v668 = vadd.f32 %v538, %v636
      %v669 = vadd.f32 %v541, %v637
      %v670 = vadd.f32 %v546, %v638
      %v671 = vadd.f32 %v549, %v639
      %v672 = vadd.f32 %v554, %v640
      %v673 = vadd.f32 %v557, %v641
      %v674 = vadd.f32 %v562, %v642
      %v675 = vadd.f32 %v565, %v643
      %v676 = vadd.f32 %v570, %v644
      %v677 = vadd.f32 %v573, %v645
      %v678 = vadd.f32 %v578, %v646
      %v679 = vadd.f32 %v581, %v647
      %v680 = vmax.f32 %v648, 0.0
      %v681 = vmax.f32 %v649, 0.0
      %v682 = vmax.f32 %v650, 0.0
      %v683 = vmax.f32 %v651, 0.0
      %v684 = vmax.f32 %v652, 0.0
      %v685 = vmax.f32 %v653, 0.0
      %v686 = vmax.f32 %v654, 0.0
      %v687 = vmax.f32 %v655, 0.0
      %v688 = vmax.f32 %v656, 0.0
      %v689 = vmax.f32 %v657, 0.0
      %v690 = vmax.f32 %v658, 0.0
      %v691 = vmax.f32 %v659, 0.0
      %v692 = vmax.f32 %v660, 0.0
      %v693 = vmax.f32 %v661, 0.0
      %v694 = vmax.f32 %v662, 0.0
      %v695 = vmax.f32 %v663, 0.0
      %v696 = vmax.f32 %v664, 0.0
      %v697 = vmax.f32 %v665, 0.0
      %v698 = vmax.f32 %v666, 0.0
      %v699 = vmax.f32 %v667, 0.0
      %v700 = vmax.f32 %v668, 0.0
      %v701 = vmax.f32 %v669, 0.0
      %v702 = vmax.f32 %v670, 0.0
      %v703 = vmax.f32 %v671, 0.0
      %v704 = vmax.f32 %v672, 0.0
      %v705 = vmax.f32 %v673, 0.0
      %v706 = vmax.f32 %v674, 0.0
      %v707 = vmax.f32 %v675, 0.0
      %v708 = vmax.f32 %v676, 0.0
      %v709 = vmax.f32 %v677, 0.0
      %v710 = vmax.f32 %v678, 0.0
      %v711 = vmax.f32 %v679, 0.0
      %v712 = vpack.c.bf16 %v681, %v680
      %v713 = vpack.c.bf16 %v683, %v682
      %v714 = vpack.c.bf16 %v685, %v684
      %v715 = vpack.c.bf16 %v687, %v686
      %v716 = vpack.c.bf16 %v689, %v688
      %v717 = vpack.c.bf16 %v691, %v690
      %v718 = vpack.c.bf16 %v693, %v692
      %v719 = vpack.c.bf16 %v695, %v694
      %v720 = vpack.c.bf16 %v697, %v696
      %v721 = vpack.c.bf16 %v699, %v698
      %v722 = vpack.c.bf16 %v701, %v700
      %v723 = vpack.c.bf16 %v703, %v702
      %v724 = vpack.c.bf16 %v705, %v704
      %v725 = vpack.c.bf16 %v707, %v706
      %v726 = vpack.c.bf16 %v709, %v708
      %v727 = vpack.c.bf16 %v711, %v710
      %v744 = vunpack.c.l.b16 %v712
      %v745 = vunpack.c.h.b16 %v712
      %v746 = vunpack.c.l.b16 %v713
      %v747 = vunpack.c.h.b16 %v713
      %v748 = vunpack.c.l.b16 %v714
      %v749 = vunpack.c.h.b16 %v714
      %v750 = vunpack.c.l.b16 %v715
      %v751 = vunpack.c.h.b16 %v715
      %v752 = vunpack.c.l.b16 %v716
      %v753 = vunpack.c.h.b16 %v716
      %v754 = vunpack.c.l.b16 %v717
      %v755 = vunpack.c.h.b16 %v717
      %v756 = vunpack.c.l.b16 %v718
      %v757 = vunpack.c.h.b16 %v718
      %v758 = vunpack.c.l.b16 %v719
      %v759 = vunpack.c.h.b16 %v719
      %v760 = vunpack.c.l.b16 %v720
      %v761 = vunpack.c.h.b16 %v720
      %v762 = vunpack.c.l.b16 %v721
      %v763 = vunpack.c.h.b16 %v721
      %v764 = vunpack.c.l.b16 %v722
      %v765 = vunpack.c.h.b16 %v722
      %v766 = vunpack.c.l.b16 %v723
      %v767 = vunpack.c.h.b16 %v723
      %v768 = vunpack.c.l.b16 %v724
      %v769 = vunpack.c.h.b16 %v724
      %v770 = vunpack.c.l.b16 %v725
      %v771 = vunpack.c.h.b16 %v725
      %v772 = vunpack.c.l.b16 %v726
      %v773 = vunpack.c.h.b16 %v726
      %v774 = vunpack.c.l.b16 %v727
      %v775 = vunpack.c.h.b16 %v727
      %v776 = vpack.c.b16 %v744, %v744
      %v777 = vpack.c.b16 %v745, %v745
      %v778 = vpack.c.b16 %v746, %v746
      %v779 = vpack.c.b16 %v747, %v747
      %v780 = vpack.c.b16 %v748, %v748
      %v781 = vpack.c.b16 %v749, %v749
      %v782 = vpack.c.b16 %v750, %v750
      %v783 = vpack.c.b16 %v751, %v751
      %v784 = vpack.c.b16 %v752, %v752
      %v785 = vpack.c.b16 %v753, %v753
      %v786 = vpack.c.b16 %v754, %v754
      %v787 = vpack.c.b16 %v755, %v755
      %v788 = vpack.c.b16 %v756, %v756
      %v789 = vpack.c.b16 %v757, %v757
      %v790 = vpack.c.b16 %v758, %v758
      %v791 = vpack.c.b16 %v759, %v759
      %v792 = vpack.c.b16 %v760, %v760
      %v793 = vpack.c.b16 %v761, %v761
      %v794 = vpack.c.b16 %v762, %v762
      %v795 = vpack.c.b16 %v763, %v763
      %v796 = vpack.c.b16 %v764, %v764
      %v797 = vpack.c.b16 %v765, %v765
      %v798 = vpack.c.b16 %v766, %v766
      %v799 = vpack.c.b16 %v767, %v767
      %v800 = vpack.c.b16 %v768, %v768
      %v801 = vpack.c.b16 %v769, %v769
      %v802 = vpack.c.b16 %v770, %v770
      %v803 = vpack.c.b16 %v771, %v771
      %v804 = vpack.c.b16 %v772, %v772
      %v805 = vpack.c.b16 %v773, %v773
      %v806 = vpack.c.b16 %v774, %v774
      %v807 = vpack.c.b16 %v775, %v775
      %840 = vst [vmem:[%s221] sm:$0xf] %v776
      %841 = vst [vmem:[%s221 + $0x4] sm:$0xf] %v777
      %842 = vst [vmem:[%s221 + $0x8] sm:$0xf] %v778
      %843 = vst [vmem:[%s221 + $0xc] sm:$0xf] %v779
      %844 = vst [vmem:[%s221 + $0x10] sm:$0xf] %v780
      %845 = vst [vmem:[%s221 + $0x14] sm:$0xf] %v781
      %846 = vst [vmem:[%s221 + $0x18] sm:$0xf] %v782
      %847 = vst [vmem:[%s221 + $0x1c] sm:$0xf] %v783
      %848 = vst [vmem:[%s221 + $0x20] sm:$0xf] %v784
      %849 = vst [vmem:[%s221 + $0x24] sm:$0xf] %v785
      %850 = vst [vmem:[%s221 + $0x28] sm:$0xf] %v786
      %851 = vst [vmem:[%s221 + $0x2c] sm:$0xf] %v787
      %852 = vst [vmem:[%s221 + $0x30] sm:$0xf] %v788
      %853 = vst [vmem:[%s221 + $0x34] sm:$0xf] %v789
      %854 = vst [vmem:[%s221 + $0x38] sm:$0xf] %v790
      %855 = vst [vmem:[%s221 + $0x3c] sm:$0xf] %v791
      %856 = vst [vmem:[%s221 + $0x40] sm:$0xf] %v792
      %857 = vst [vmem:[%s221 + $0x44] sm:$0xf] %v793
      %858 = vst [vmem:[%s221 + $0x48] sm:$0xf] %v794
      %859 = vst [vmem:[%s221 + $0x4c] sm:$0xf] %v795
      %860 = vst [vmem:[%s221 + $0x50] sm:$0xf] %v796
      %861 = vst [vmem:[%s221 + $0x54] sm:$0xf] %v797
      %862 = vst [vmem:[%s221 + $0x58] sm:$0xf] %v798
      %863 = vst [vmem:[%s221 + $0x5c] sm:$0xf] %v799
      %864 = vst [vmem:[%s221 + $0x60] sm:$0xf] %v800
      %865 = vst [vmem:[%s221 + $0x64] sm:$0xf] %v801
      %866 = vst [vmem:[%s221 + $0x68] sm:$0xf] %v802
      %867 = vst [vmem:[%s221 + $0x6c] sm:$0xf] %v803
      %868 = vst [vmem:[%s221 + $0x70] sm:$0xf] %v804
      %869 = vst [vmem:[%s221 + $0x74] sm:$0xf] %v805
      %870 = vst [vmem:[%s221 + $0x78] sm:$0xf] %v806
      %871 = vst [vmem:[%s221 + $0x7c] sm:$0xf] %v807
      %s872 = smul.u32 32, %s15
      %p873 = scmp.lt.s32.totalorder %s872, 63
      %s874 = scalar_select %p873, %s872, 63
      %s875 = smul.addr %s874, 4
      %s876 = scalar_lea.vmem %s4, %s875
      // Predicated region
      $region37: #{basic_block_forward.3} parent=35 // pred_check
        %p877 = pneg %p127
      $region38: #{basic_block_forward.3} parent=35 // pred_check_branch
        %879 = sbr.rel (%p877) target = $region40
      $region39: #{basic_block_forward.3} parent=35 // pred_region
        %s880 = smul.u32 32, %s15
      $region40: #{basic_block_forward.3} parent=35 // pred_fallthru
        _
    $region36: #{basic_block_forward.3} parent=5 // pred_fallthru
      _
    %p881 = scmp.le.s32.totalorder 2, %s10
    // Predicated region
    $region41: #{basic_block_forward.3} parent=5 // pred_check
      %p882 = pneg %p881
    $region42: #{basic_block_forward.3} parent=5 // pred_check_branch
      %884 = sbr.rel (%p882) target = $region44
    $region43: #{basic_block_forward.3} parent=5 // pred_region
      %s885 = ssub.s32 %s10, 2
      // Predicated region
      $region45: #{basic_block_forward.3} parent=43 // pred_check
        %p886 = pneg %p133
      $region46: #{basic_block_forward.3} parent=43 // pred_check_branch
        %888 = sbr.rel (%p886) target = $region48
      $region47: #{basic_block_forward.3} parent=43 // pred_region
        %s889 = smul.u32 32, %s16
        %p890 = scmp.lt.s32.totalorder %s889, 63
        %s891 = scalar_select %p890, %s889, 63
        %s892 = smul.addr %s891, 4
        %s893 = scalar_lea.vmem %s4, %s892
      $region48: #{basic_block_forward.3} parent=43 // pred_fallthru
        _
    $region44: #{basic_block_forward.3} parent=5 // pred_fallthru
      _
  $region6: #{basic_block_forward.3} parent=0 // loop_footer
    %s14 = sadd.s32 1, %s10
  $region7: #{basic_block_forward.3} parent=0 // loop_footer_branch
    %9 = sbr.rel target = $region3
  $region8: #{basic_block_forward.3} parent=0 // loop_exit
    _

</llo_original>
